<compile_context>
chip_gen: v6e
topology: v6e:2x2x1
jax: 0.10.0
libtpu: 0.0.40
codegen_flags: <defaults>
</compile_context>

<pallas_src>
import numpy as np
import jax
import jax.numpy as jnp
from jax import lax
from jax.experimental import pallas as pl
from jax.experimental.pallas import tpu as pltpu

EPS = 1e-5
SLOPE = 0.01              # nn.LeakyReLU() default negative_slope
MXU_DTYPE = jnp.bfloat16  # MXU operand dtype (accumulation stays f32)

# Sub-pixel decomposition of ConvTranspose2d(3x3, stride 2, pad 1, output_padding 1).
# Output pixel (2m+dr, 2n+dc) (phase p = 2*dr + dc) reads stride-1 source pixels
# {(m,n),(m,n+1),(m+1,n),(m+1,n+1)} (stack slot k = 0..3).  Entries are (k, a', b') into
# the flipped/transposed forward-conv kernel wc[o, c, a', b'] = wt[c, o, 2-a', 2-b'].
PHASE_TAPS = (
    ((0, 1, 1),),                                     # (dr, dc) = (0, 0)
    ((0, 1, 0), (1, 1, 2)),                           # (0, 1)
    ((0, 0, 1), (2, 2, 1)),                           # (1, 0)
    ((0, 0, 0), (1, 0, 2), (2, 2, 0), (3, 2, 2)),     # (1, 1)
)


def _round_up(v, m):
    return (v + m - 1) // m * m


# ---------------------------------------------------------------------------
# Host-side boundary masks (functions of (h, w) only, tiled over the batch lanes)
# ---------------------------------------------------------------------------
def conv1_masks(H, W, N):
    h = np.arange(H * W) // W
    w = np.arange(H * W) % W
    m = np.zeros((9, H * W), np.float32)
    for t in range(9):
        kh, kw = divmod(t, 3)
        m[t] = ((h + kh - 1 >= 0) & (h + kh - 1 < H) &
                (w + kw - 1 >= 0) & (w + kw - 1 < W)).astype(np.float32)
    return jnp.asarray(np.tile(m, (1, N)))            # (9, N*H*W)


def convt_masks(H, W, N):
    h = np.arange(H * W) // W
    w = np.arange(H * W) % W
    ones = np.ones(H * W, np.float32)
    mcol = (w < W - 1).astype(np.float32)
    mrow = (h < H - 1).astype(np.float32)
    m = np.stack([ones, mcol, mrow, mcol * mrow])
    return jnp.asarray(np.tile(m, (1, N)))            # (4, N*H*W)


# ---------------------------------------------------------------------------
# The single fused kernel
# ---------------------------------------------------------------------------
def make_resblock_decoder_kernel(N, H, W, Ci_p, Ch_p):
    HW = H * W
    NHW = N * HW
    inv = 1.0 / float(NHW)

    def kernel(x_ref, g1_ref, b1_ref, g2_ref, b2_ref,
               w1_ref, bias1_ref, m1_ref,
               w2_ref, bias2_ref, m2_ref,
               o_ref, stk1_ref, stk2_ref):

        def shifted(arr, s):
            # source lane l becomes arr[l + s]; wrapped / out-of-image lanes are zeroed by
            # the boundary masks, so the circular rotate is exact.
            return arr if s == 0 else pltpu.roll(arr, (-s) % NHW, axis=1)

        # ---- BN1 (training-mode batch stats) + LeakyReLU, f32, per-channel rows ----
        x = x_ref[...]                                            # (Ci_p, N*HW)
        mean1 = jnp.sum(x, axis=1, keepdims=True) * inv
        d1 = x - mean1
        var1 = jnp.sum(d1 * d1, axis=1, keepdims=True) * inv      # biased variance
        a1 = d1 * (g1_ref[...] * lax.rsqrt(var1 + EPS)) + b1_ref[...]
        a1 = jnp.where(a1 >= 0.0, a1, SLOPE * a1)

        # ---- Conv2d 3x3/s1/p1: 9 taps folded into ONE MXU dot (K = 9*Ci_p) ----
        for t in range(9):
            kh, kw = divmod(t, 3)
            s = (kh - 1) * W + (kw - 1)
            tap = shifted(a1, s)
            if t != 4:                                            # center tap: mask == 1
                tap = tap * m1_ref[t:t + 1, :]
            stk1_ref[pl.ds(t * Ci_p, Ci_p), :] = tap
        c1 = jnp.dot(w1_ref[...], stk1_ref[...].astype(MXU_DTYPE),
                     preferred_element_type=jnp.float32) + bias1_ref[...]

        # ---- BN2 stats on the VMEM-resident conv1 output (no HBM round trip) ----
        mean2 = jnp.sum(c1, axis=1, keepdims=True) * inv
        d2 = c1 - mean2
        var2 = jnp.sum(d2 * d2, axis=1, keepdims=True) * inv
        a2 = d2 * (g2_ref[...] * lax.rsqrt(var2 + EPS)) + b2_ref[...]
        a2 = jnp.where(a2 >= 0.0, a2, SLOPE * a2)

        # ---- Fused ConvT(main on a2) + ConvT(bypass on raw x) + residual add ----
        # All 4 sub-pixel phases share the same 4 shifted/masked sources, so the 4 phase
        # matmuls collapse into ONE dot with M = 4*Cout, K = 4*(Ch_p + Ci_p).
        for k, s in enumerate((0, 1, W, W + 1)):
            a2s = shifted(a2, s)
            xs = shifted(x, s)
            if k != 0:                                            # slot 0: mask == 1
                mk = m2_ref[k:k + 1, :]
                a2s = a2s * mk
                xs = xs * mk
            stk2_ref[pl.ds(k * Ch_p, Ch_p), :] = a2s
            stk2_ref[pl.ds(4 * Ch_p + k * Ci_p, Ci_p), :] = xs
        o_ref[...] = jnp.dot(w2_ref[...], stk2_ref[...].astype(MXU_DTYPE),
                             preferred_element_type=jnp.float32) + bias2_ref[...]

    return kernel


# ---------------------------------------------------------------------------
# Forward pass wrapper
# ---------------------------------------------------------------------------
def res_block_decoder_forward(x_nchw, p):
    N, Cin, H, W = x_nchw.shape
    Chid = p["w1"].shape[0]
    Cout = p["wt2"].shape[1]
    HW = H * W
    NHW = N * HW
    Ci_p = _round_up(Cin, 8)
    Ch_p = _round_up(Chid, 8)
    Kc = 4 * (Ch_p + Ci_p)

    # (C, N*HW) layout: channels on sublanes, flat (n, h, w) on the lane axis.
    xc = jnp.transpose(x_nchw, (1, 0, 2, 3)).reshape(Cin, NHW)
    xc = jnp.pad(xc, ((0, Ci_p - Cin), (0, 0)))

    def pad_col(v, c_pad):
        return jnp.pad(v.astype(jnp.float32).reshape(-1, 1),
                       ((0, c_pad - v.shape[0]), (0, 0)))

    g1 = pad_col(p["g1"], Ci_p)
    b1 = pad_col(p["b1"], Ci_p)
    g2 = pad_col(p["g2"], Ch_p)
    b2 = pad_col(p["b2"], Ch_p)
    bias1 = pad_col(p["bias1"], Ch_p)

    # conv1 weight -> (Ch_p, 9*Ci_p), tap-major on K, pre-cast to bf16.
    w1p = jnp.zeros((Ch_p, Ci_p, 3, 3), jnp.float32).at[:Chid, :Cin].set(p["w1"])
    w1s = jnp.transpose(w1p, (0, 2, 3, 1)).reshape(Ch_p, 9 * Ci_p).astype(MXU_DTYPE)

    # Transposed-conv weights -> one fused (4*Cout, 4*(Ch_p+Ci_p)) matrix: phases on M,
    # (source slot k, channel) on K; absent taps are zero rows.
    wc_main = jnp.transpose(p["wt2"][:, :, ::-1, ::-1], (1, 0, 2, 3))  # (Cout, Chid, 3, 3)
    wc_byp = jnp.transpose(p["wtb"][:, :, ::-1, ::-1], (1, 0, 2, 3))   # (Cout, Cin, 3, 3)
    wbig = jnp.zeros((4 * Cout, Kc), jnp.float32)
    for ph, taps in enumerate(PHASE_TAPS):
        for k, a, b in taps:
            wbig = wbig.at[ph * Cout:(ph + 1) * Cout,
                           k * Ch_p:k * Ch_p + Chid].set(wc_main[:, :, a, b])
            wbig = wbig.at[ph * Cout:(ph + 1) * Cout,
                           4 * Ch_p + k * Ci_p:4 * Ch_p + k * Ci_p + Cin].set(
                               wc_byp[:, :, a, b])
    wbig = wbig.astype(MXU_DTYPE)
    bias2 = jnp.tile((p["bt2"] + p["btb"]).astype(jnp.float32).reshape(-1, 1), (4, 1))

    m1 = conv1_masks(H, W, N)
    m2 = convt_masks(H, W, N)

    flops = 2 * NHW * 9 * (Chid * Cin + Cout * Chid + Cout * Cin)
    bytes_accessed = int(4 * (Ci_p + 4 * Cout + 13) * NHW
                         + 2 * (Ch_p * 9 * Ci_p + 4 * Cout * Kc))

    y = pl.pallas_call(
        make_resblock_decoder_kernel(N, H, W, Ci_p, Ch_p),
        out_shape=jax.ShapeDtypeStruct((4 * Cout, NHW), jnp.float32),
        grid=(1,),
        in_specs=[
            pl.BlockSpec((Ci_p, NHW), lambda i: (0, 0)),
            pl.BlockSpec((Ci_p, 1), lambda i: (0, 0)),
            pl.BlockSpec((Ci_p, 1), lambda i: (0, 0)),
            pl.BlockSpec((Ch_p, 1), lambda i: (0, 0)),
            pl.BlockSpec((Ch_p, 1), lambda i: (0, 0)),
            pl.BlockSpec((Ch_p, 9 * Ci_p), lambda i: (0, 0)),
            pl.BlockSpec((Ch_p, 1), lambda i: (0, 0)),
            pl.BlockSpec((9, NHW), lambda i: (0, 0)),
            pl.BlockSpec((4 * Cout, Kc), lambda i: (0, 0)),
            pl.BlockSpec((4 * Cout, 1), lambda i: (0, 0)),
            pl.BlockSpec((4, NHW), lambda i: (0, 0)),
        ],
        out_specs=pl.BlockSpec((4 * Cout, NHW), lambda i: (0, 0)),
        scratch_shapes=[pltpu.VMEM((9 * Ci_p, NHW), jnp.float32),
                        pltpu.VMEM((Kc, NHW), jnp.float32)],
        compiler_params=pltpu.CompilerParams(dimension_semantics=("arbitrary",)),
        cost_estimate=pl.CostEstimate(flops=flops, transcendentals=Cin + Chid,
                                      bytes_accessed=bytes_accessed),
    )(xc, g1, b1, g2, b2, w1s, bias1, m1, wbig, bias2, m2)

    # Depth-to-space: phase-major (dr, dc, Cout, n, h, w) -> (N, Cout, 2H, 2W).
    # TODO(synk): at production sizes interleave the dc phases in-kernel (XLU) to halve
    # this wrapper pass; kept in XLA here to preserve unmasked lane-dense stores.
    y = y.reshape(2, 2, Cout, N, H, W)
    y = jnp.transpose(y, (3, 2, 4, 0, 5, 1)).reshape(N, Cout, 2 * H, 2 * W)
    return y


# ---------------------------------------------------------------------------
# Pure-JAX reference (lax convs) for validation
# ---------------------------------------------------------------------------
def ref_forward(x, p):
    def bn(x, g, b):
        mean = x.mean(axis=(0, 2, 3), keepdims=True)
        var = x.var(axis=(0, 2, 3), keepdims=True)
        return (x - mean) / jnp.sqrt(var + EPS) * g.reshape(1, -1, 1, 1) \
               + b.reshape(1, -1, 1, 1)

    def lrelu(x):
        return jnp.where(x >= 0, x, SLOPE * x)

    def convT(x, wt, b):
        wc = jnp.transpose(wt[:, :, ::-1, ::-1], (1, 0, 2, 3))
        y = lax.conv_general_dilated(
            x, wc, (1, 1), ((1, 2), (1, 2)), lhs_dilation=(2, 2),
            dimension_numbers=("NCHW", "OIHW", "NCHW"))
        return y + b.reshape(1, -1, 1, 1)

    h = lrelu(bn(x, p["g1"], p["b1"]))
    h = lax.conv_general_dilated(
        h, p["w1"], (1, 1), ((1, 1), (1, 1)),
        dimension_numbers=("NCHW", "OIHW", "NCHW")) + p["bias1"].reshape(1, -1, 1, 1)
    h = lrelu(bn(h, p["g2"], p["b2"]))
    return convT(h, p["wt2"], p["bt2"]) + convT(x, p["wtb"], p["btb"])


# ---------------------------------------------------------------------------
if __name__ == "__main__":
    key = jax.random.PRNGKey(0)
    N, Cin, Cout, H, W = 2, 4, 4, 16, 16
    Chid = Cout  # hidden_nc defaults to output_nc
    ks = jax.random.split(key, 7)

    x = jax.random.normal(ks[0], (N, Cin, H, W), dtype=jnp.float32)
    params = dict(
        # BatchNorm2d defaults: weight=1, bias=0
        g1=jnp.ones((Cin,), jnp.float32), b1=jnp.zeros((Cin,), jnp.float32),
        g2=jnp.ones((Chid,), jnp.float32), b2=jnp.zeros((Chid,), jnp.float32),
        # Conv2d(input_nc, hidden_nc, 3)
        w1=0.1 * jax.random.normal(ks[1], (Chid, Cin, 3, 3), jnp.float32),
        bias1=0.1 * jax.random.normal(ks[2], (Chid,), jnp.float32),
        # ConvTranspose2d(hidden_nc, output_nc, 3) -- weight shape (in, out, kH, kW)
        wt2=0.1 * jax.random.normal(ks[3], (Chid, Cout, 3, 3), jnp.float32),
        bt2=0.1 * jax.random.normal(ks[4], (Cout,), jnp.float32),
        # bypass ConvTranspose2d(input_nc, output_nc, 3)
        wtb=0.1 * jax.random.normal(ks[5], (Cin, Cout, 3, 3), jnp.float32),
        btb=0.1 * jax.random.normal(ks[6], (Cout,), jnp.float32),
    )

    fwd = jax.jit(res_block_decoder_forward)
    out = jax.block_until_ready(fwd(x, params))
    assert out.shape == (N, Cout, 2 * H, 2 * W), out.shape

    ref = ref_forward(x, params)
    err = float(jnp.max(jnp.abs(out - ref)))
    # bf16 MXU operands with f32 accumulation: tolerance absorbs bf16 rounding.
    assert err < 5e-2, f"max abs err vs reference = {err}"

    print("KERNEL_OK")
</pallas_src>

<mosaic_0001>
module attributes {stable_mosaic.version = 11 : i64} {
  func.func @kernel(%arg0: i32, %arg1: memref<8x512xf32, #tpu.memory_space<vmem>>, %arg2: memref<8x1xf32, #tpu.memory_space<vmem>>, %arg3: memref<8x1xf32, #tpu.memory_space<vmem>>, %arg4: memref<8x1xf32, #tpu.memory_space<vmem>>, %arg5: memref<8x1xf32, #tpu.memory_space<vmem>>, %arg6: memref<8x72xbf16, #tpu.memory_space<vmem>>, %arg7: memref<8x1xf32, #tpu.memory_space<vmem>>, %arg8: memref<9x512xf32, #tpu.memory_space<vmem>>, %arg9: memref<16x64xbf16, #tpu.memory_space<vmem>>, %arg10: memref<16x1xf32, #tpu.memory_space<vmem>>, %arg11: memref<4x512xf32, #tpu.memory_space<vmem>>, %arg12: memref<16x512xf32, #tpu.memory_space<vmem>>, %arg13: memref<72x512xf32, #tpu.memory_space<vmem>>, %arg14: memref<64x512xf32, #tpu.memory_space<vmem>>) attributes {dimension_semantics = [#tpu.dimension_semantics<arbitrary>], iteration_bounds = array<i64: 1>, scalar_prefetch = 0 : i64, scratch_operands = 2 : i64, tpu.core_type = #tpu.core_type<tc>, window_params = [{pipeline_mode = #tpu.pipeline_mode<synchronous>, transform_indices = @transform_0, window_bounds = array<i64: 8, 512>}, {pipeline_mode = #tpu.pipeline_mode<synchronous>, transform_indices = @transform_1, window_bounds = array<i64: 8, 1>}, {pipeline_mode = #tpu.pipeline_mode<synchronous>, transform_indices = @transform_2, window_bounds = array<i64: 8, 1>}, {pipeline_mode = #tpu.pipeline_mode<synchronous>, transform_indices = @transform_3, window_bounds = array<i64: 8, 1>}, {pipeline_mode = #tpu.pipeline_mode<synchronous>, transform_indices = @transform_4, window_bounds = array<i64: 8, 1>}, {pipeline_mode = #tpu.pipeline_mode<synchronous>, transform_indices = @transform_5, window_bounds = array<i64: 8, 72>}, {pipeline_mode = #tpu.pipeline_mode<synchronous>, transform_indices = @transform_6, window_bounds = array<i64: 8, 1>}, {pipeline_mode = #tpu.pipeline_mode<synchronous>, transform_indices = @transform_7, window_bounds = array<i64: 9, 512>}, {pipeline_mode = #tpu.pipeline_mode<synchronous>, transform_indices = @transform_8, window_bounds = array<i64: 16, 64>}, {pipeline_mode = #tpu.pipeline_mode<synchronous>, transform_indices = @transform_9, window_bounds = array<i64: 16, 1>}, {pipeline_mode = #tpu.pipeline_mode<synchronous>, transform_indices = @transform_10, window_bounds = array<i64: 4, 512>}, {pipeline_mode = #tpu.pipeline_mode<synchronous>, transform_indices = @transform_11, window_bounds = array<i64: 16, 512>}]} {
    %c0 = arith.constant 0 : index
    %c0_0 = arith.constant 0 : index
    %0 = vector.load %arg1[%c0, %c0_0] : memref<8x512xf32, #tpu.memory_space<vmem>>, vector<8x512xf32>
    %cst = arith.constant dense<0.000000e+00> : vector<8xf32>
    %1 = vector.multi_reduction <add>, %0, %cst [1] : vector<8x512xf32> to vector<8xf32>
    %2 = vector.shape_cast %1 : vector<8xf32> to vector<8x1xf32>
    %cst_1 = arith.constant 0.001953125 : f32
    %3 = vector.broadcast %cst_1 : f32 to vector<8x1xf32>
    %4 = arith.mulf %2, %3 : vector<8x1xf32>
    %5 = vector.broadcast %4 : vector<8x1xf32> to vector<8x512xf32>
    %6 = arith.subf %0, %5 : vector<8x512xf32>
    %7 = arith.mulf %6, %6 : vector<8x512xf32>
    %cst_2 = arith.constant dense<0.000000e+00> : vector<8xf32>
    %8 = vector.multi_reduction <add>, %7, %cst_2 [1] : vector<8x512xf32> to vector<8xf32>
    %9 = vector.shape_cast %8 : vector<8xf32> to vector<8x1xf32>
    %cst_3 = arith.constant 0.001953125 : f32
    %10 = vector.broadcast %cst_3 : f32 to vector<8x1xf32>
    %11 = arith.mulf %9, %10 : vector<8x1xf32>
    %c0_4 = arith.constant 0 : index
    %c0_5 = arith.constant 0 : index
    %12 = vector.load %arg2[%c0_4, %c0_5] : memref<8x1xf32, #tpu.memory_space<vmem>>, vector<8x1xf32>
    %cst_6 = arith.constant 9.99999974E-6 : f32
    %13 = vector.broadcast %cst_6 : f32 to vector<8x1xf32>
    %14 = arith.addf %11, %13 : vector<8x1xf32>
    %15 = math.rsqrt %14 : vector<8x1xf32>
    %16 = arith.mulf %12, %15 : vector<8x1xf32>
    %17 = vector.broadcast %16 : vector<8x1xf32> to vector<8x512xf32>
    %18 = arith.mulf %6, %17 : vector<8x512xf32>
    %c0_7 = arith.constant 0 : index
    %c0_8 = arith.constant 0 : index
    %19 = vector.load %arg3[%c0_7, %c0_8] : memref<8x1xf32, #tpu.memory_space<vmem>>, vector<8x1xf32>
    %20 = vector.broadcast %19 : vector<8x1xf32> to vector<8x512xf32>
    %21 = arith.addf %18, %20 : vector<8x512xf32>
    %cst_9 = arith.constant 0.000000e+00 : f32
    %22 = vector.broadcast %cst_9 : f32 to vector<8x512xf32>
    %23 = arith.cmpf oge, %21, %22 : vector<8x512xf32>
    %cst_10 = arith.constant 0.00999999977 : f32
    %24 = vector.broadcast %cst_10 : f32 to vector<8x512xf32>
    %25 = arith.mulf %24, %21 : vector<8x512xf32>
    %26 = arith.select %23, %21, %25 : vector<8x512xi1>, vector<8x512xf32>
    %c17_i32 = arith.constant 17 : i32
    %27 = tpu.dynamic_rotate %26 by %c17_i32 dim 1 : vector<8x512xf32>, i32 -> vector<8x512xf32>
    %c0_11 = arith.constant 0 : index
    %c0_12 = arith.constant 0 : index
    %28 = vector.load %arg8[%c0_11, %c0_12] : memref<9x512xf32, #tpu.memory_space<vmem>>, vector<1x512xf32>
    %29 = vector.broadcast %28 : vector<1x512xf32> to vector<8x512xf32>
    %30 = arith.mulf %27, %29 : vector<8x512xf32>
    %c0_13 = arith.constant 0 : index
    %c0_14 = arith.constant 0 : index
    %31 = vector.load %arg13[%c0_13, %c0_14] : memref<72x512xf32, #tpu.memory_space<vmem>>, vector<8x512xf32>
    tpu.vector_store %arg13[%c0_13, %c0_14], %30 {strides = array<i32>} : memref<72x512xf32, #tpu.memory_space<vmem>>, vector<8x512xf32>,
    %c16_i32 = arith.constant 16 : i32
    %32 = tpu.dynamic_rotate %26 by %c16_i32 dim 1 : vector<8x512xf32>, i32 -> vector<8x512xf32>
    %c1 = arith.constant 1 : index
    %c0_15 = arith.constant 0 : index
    %33 = vector.load %arg8[%c1, %c0_15] : memref<9x512xf32, #tpu.memory_space<vmem>>, vector<1x512xf32>
    %34 = vector.broadcast %33 : vector<1x512xf32> to vector<8x512xf32>
    %35 = arith.mulf %32, %34 : vector<8x512xf32>
    %c8 = arith.constant 8 : index
    %c0_16 = arith.constant 0 : index
    %36 = vector.load %arg13[%c8, %c0_16] : memref<72x512xf32, #tpu.memory_space<vmem>>, vector<8x512xf32>
    tpu.vector_store %arg13[%c8, %c0_16], %35 {strides = array<i32>} : memref<72x512xf32, #tpu.memory_space<vmem>>, vector<8x512xf32>,
    %c15_i32 = arith.constant 15 : i32
    %37 = tpu.dynamic_rotate %26 by %c15_i32 dim 1 : vector<8x512xf32>, i32 -> vector<8x512xf32>
    %c2 = arith.constant 2 : index
    %c0_17 = arith.constant 0 : index
    %38 = vector.load %arg8[%c2, %c0_17] : memref<9x512xf32, #tpu.memory_space<vmem>>, vector<1x512xf32>
    %39 = vector.broadcast %38 : vector<1x512xf32> to vector<8x512xf32>
    %40 = arith.mulf %37, %39 : vector<8x512xf32>
    %c16 = arith.constant 16 : index
    %c0_18 = arith.constant 0 : index
    %41 = vector.load %arg13[%c16, %c0_18] : memref<72x512xf32, #tpu.memory_space<vmem>>, vector<8x512xf32>
    tpu.vector_store %arg13[%c16, %c0_18], %40 {strides = array<i32>} : memref<72x512xf32, #tpu.memory_space<vmem>>, vector<8x512xf32>,
    %c1_i32 = arith.constant 1 : i32
    %42 = tpu.dynamic_rotate %26 by %c1_i32 dim 1 : vector<8x512xf32>, i32 -> vector<8x512xf32>
    %c3 = arith.constant 3 : index
    %c0_19 = arith.constant 0 : index
    %43 = vector.load %arg8[%c3, %c0_19] : memref<9x512xf32, #tpu.memory_space<vmem>>, vector<1x512xf32>
    %44 = vector.broadcast %43 : vector<1x512xf32> to vector<8x512xf32>
    %45 = arith.mulf %42, %44 : vector<8x512xf32>
    %c24 = arith.constant 24 : index
    %c0_20 = arith.constant 0 : index
    %46 = vector.load %arg13[%c24, %c0_20] : memref<72x512xf32, #tpu.memory_space<vmem>>, vector<8x512xf32>
    tpu.vector_store %arg13[%c24, %c0_20], %45 {strides = array<i32>} : memref<72x512xf32, #tpu.memory_space<vmem>>, vector<8x512xf32>,
    %c32 = arith.constant 32 : index
    %c0_21 = arith.constant 0 : index
    %47 = vector.load %arg13[%c32, %c0_21] : memref<72x512xf32, #tpu.memory_space<vmem>>, vector<8x512xf32>
    tpu.vector_store %arg13[%c32, %c0_21], %26 {strides = array<i32>} : memref<72x512xf32, #tpu.memory_space<vmem>>, vector<8x512xf32>,
    %c511_i32 = arith.constant 511 : i32
    %48 = tpu.dynamic_rotate %26 by %c511_i32 dim 1 : vector<8x512xf32>, i32 -> vector<8x512xf32>
    %c5 = arith.constant 5 : index
    %c0_22 = arith.constant 0 : index
    %49 = vector.load %arg8[%c5, %c0_22] : memref<9x512xf32, #tpu.memory_space<vmem>>, vector<1x512xf32>
    %50 = vector.broadcast %49 : vector<1x512xf32> to vector<8x512xf32>
    %51 = arith.mulf %48, %50 : vector<8x512xf32>
    %c40 = arith.constant 40 : index
    %c0_23 = arith.constant 0 : index
    %52 = vector.load %arg13[%c40, %c0_23] : memref<72x512xf32, #tpu.memory_space<vmem>>, vector<8x512xf32>
    tpu.vector_store %arg13[%c40, %c0_23], %51 {strides = array<i32>} : memref<72x512xf32, #tpu.memory_space<vmem>>, vector<8x512xf32>,
    %c497_i32 = arith.constant 497 : i32
    %53 = tpu.dynamic_rotate %26 by %c497_i32 dim 1 : vector<8x512xf32>, i32 -> vector<8x512xf32>
    %c6 = arith.constant 6 : index
    %c0_24 = arith.constant 0 : index
    %54 = vector.load %arg8[%c6, %c0_24] : memref<9x512xf32, #tpu.memory_space<vmem>>, vector<1x512xf32>
    %55 = vector.broadcast %54 : vector<1x512xf32> to vector<8x512xf32>
    %56 = arith.mulf %53, %55 : vector<8x512xf32>
    %c48 = arith.constant 48 : index
    %c0_25 = arith.constant 0 : index
    %57 = vector.load %arg13[%c48, %c0_25] : memref<72x512xf32, #tpu.memory_space<vmem>>, vector<8x512xf32>
    tpu.vector_store %arg13[%c48, %c0_25], %56 {strides = array<i32>} : memref<72x512xf32, #tpu.memory_space<vmem>>, vector<8x512xf32>,
    %c496_i32 = arith.constant 496 : i32
    %58 = tpu.dynamic_rotate %26 by %c496_i32 dim 1 : vector<8x512xf32>, i32 -> vector<8x512xf32>
    %c7 = arith.constant 7 : index
    %c0_26 = arith.constant 0 : index
    %59 = vector.load %arg8[%c7, %c0_26] : memref<9x512xf32, #tpu.memory_space<vmem>>, vector<1x512xf32>
    %60 = vector.broadcast %59 : vector<1x512xf32> to vector<8x512xf32>
    %61 = arith.mulf %58, %60 : vector<8x512xf32>
    %c56 = arith.constant 56 : index
    %c0_27 = arith.constant 0 : index
    %62 = vector.load %arg13[%c56, %c0_27] : memref<72x512xf32, #tpu.memory_space<vmem>>, vector<8x512xf32>
    tpu.vector_store %arg13[%c56, %c0_27], %61 {strides = array<i32>} : memref<72x512xf32, #tpu.memory_space<vmem>>, vector<8x512xf32>,
    %c495_i32 = arith.constant 495 : i32
    %63 = tpu.dynamic_rotate %26 by %c495_i32 dim 1 : vector<8x512xf32>, i32 -> vector<8x512xf32>
    %c8_28 = arith.constant 8 : index
    %c0_29 = arith.constant 0 : index
    %64 = vector.load %arg8[%c8_28, %c0_29] : memref<9x512xf32, #tpu.memory_space<vmem>>, vector<1x512xf32>
    %65 = vector.broadcast %64 : vector<1x512xf32> to vector<8x512xf32>
    %66 = arith.mulf %63, %65 : vector<8x512xf32>
    %c64 = arith.constant 64 : index
    %c0_30 = arith.constant 0 : index
    %67 = vector.load %arg13[%c64, %c0_30] : memref<72x512xf32, #tpu.memory_space<vmem>>, vector<8x512xf32>
    tpu.vector_store %arg13[%c64, %c0_30], %66 {strides = array<i32>} : memref<72x512xf32, #tpu.memory_space<vmem>>, vector<8x512xf32>,
    %c0_31 = arith.constant 0 : index
    %c0_32 = arith.constant 0 : index
    %68 = vector.load %arg6[%c0_31, %c0_32] : memref<8x72xbf16, #tpu.memory_space<vmem>>, vector<8x72xbf16>
    %c0_33 = arith.constant 0 : index
    %c0_34 = arith.constant 0 : index
    %69 = vector.load %arg13[%c0_33, %c0_34] : memref<72x512xf32, #tpu.memory_space<vmem>>, vector<72x512xf32>
    %70 = arith.truncf %69 : vector<72x512xf32> to vector<72x512xbf16>
    %cst_35 = arith.constant dense<0.000000e+00> : vector<8x512xf32>
    %71 = tpu.matmul %68, %70, %cst_35 {dimension_numbers = #tpu.dot_dimension_numbers<[1], [0], [0], [1], [0, 0, 1, 1], [], []>} : vector<8x72xbf16>, vector<72x512xbf16>, vector<8x512xf32> -> vector<8x512xf32>
    %c0_36 = arith.constant 0 : index
    %c0_37 = arith.constant 0 : index
    %72 = vector.load %arg7[%c0_36, %c0_37] : memref<8x1xf32, #tpu.memory_space<vmem>>, vector<8x1xf32>
    %73 = vector.broadcast %72 : vector<8x1xf32> to vector<8x512xf32>
    %74 = arith.addf %71, %73 : vector<8x512xf32>
    %cst_38 = arith.constant dense<0.000000e+00> : vector<8xf32>
    %75 = vector.multi_reduction <add>, %74, %cst_38 [1] : vector<8x512xf32> to vector<8xf32>
    %76 = vector.shape_cast %75 : vector<8xf32> to vector<8x1xf32>
    %cst_39 = arith.constant 0.001953125 : f32
    %77 = vector.broadcast %cst_39 : f32 to vector<8x1xf32>
    %78 = arith.mulf %76, %77 : vector<8x1xf32>
    %79 = vector.broadcast %78 : vector<8x1xf32> to vector<8x512xf32>
    %80 = arith.subf %74, %79 : vector<8x512xf32>
    %81 = arith.mulf %80, %80 : vector<8x512xf32>
    %cst_40 = arith.constant dense<0.000000e+00> : vector<8xf32>
    %82 = vector.multi_reduction <add>, %81, %cst_40 [1] : vector<8x512xf32> to vector<8xf32>
    %83 = vector.shape_cast %82 : vector<8xf32> to vector<8x1xf32>
    %cst_41 = arith.constant 0.001953125 : f32
    %84 = vector.broadcast %cst_41 : f32 to vector<8x1xf32>
    %85 = arith.mulf %83, %84 : vector<8x1xf32>
    %c0_42 = arith.constant 0 : index
    %c0_43 = arith.constant 0 : index
    %86 = vector.load %arg4[%c0_42, %c0_43] : memref<8x1xf32, #tpu.memory_space<vmem>>, vector<8x1xf32>
    %cst_44 = arith.constant 9.99999974E-6 : f32
    %87 = vector.broadcast %cst_44 : f32 to vector<8x1xf32>
    %88 = arith.addf %85, %87 : vector<8x1xf32>
    %89 = math.rsqrt %88 : vector<8x1xf32>
    %90 = arith.mulf %86, %89 : vector<8x1xf32>
    %91 = vector.broadcast %90 : vector<8x1xf32> to vector<8x512xf32>
    %92 = arith.mulf %80, %91 : vector<8x512xf32>
    %c0_45 = arith.constant 0 : index
    %c0_46 = arith.constant 0 : index
    %93 = vector.load %arg5[%c0_45, %c0_46] : memref<8x1xf32, #tpu.memory_space<vmem>>, vector<8x1xf32>
    %94 = vector.broadcast %93 : vector<8x1xf32> to vector<8x512xf32>
    %95 = arith.addf %92, %94 : vector<8x512xf32>
    %cst_47 = arith.constant 0.000000e+00 : f32
    %96 = vector.broadcast %cst_47 : f32 to vector<8x512xf32>
    %97 = arith.cmpf oge, %95, %96 : vector<8x512xf32>
    %cst_48 = arith.constant 0.00999999977 : f32
    %98 = vector.broadcast %cst_48 : f32 to vector<8x512xf32>
    %99 = arith.mulf %98, %95 : vector<8x512xf32>
    %100 = arith.select %97, %95, %99 : vector<8x512xi1>, vector<8x512xf32>
    %c0_49 = arith.constant 0 : index
    %c0_50 = arith.constant 0 : index
    %101 = vector.load %arg14[%c0_49, %c0_50] : memref<64x512xf32, #tpu.memory_space<vmem>>, vector<8x512xf32>
    tpu.vector_store %arg14[%c0_49, %c0_50], %100 {strides = array<i32>} : memref<64x512xf32, #tpu.memory_space<vmem>>, vector<8x512xf32>,
    %c32_51 = arith.constant 32 : index
    %c0_52 = arith.constant 0 : index
    %102 = vector.load %arg14[%c32_51, %c0_52] : memref<64x512xf32, #tpu.memory_space<vmem>>, vector<8x512xf32>
    tpu.vector_store %arg14[%c32_51, %c0_52], %0 {strides = array<i32>} : memref<64x512xf32, #tpu.memory_space<vmem>>, vector<8x512xf32>,
    %c511_i32_53 = arith.constant 511 : i32
    %103 = tpu.dynamic_rotate %100 by %c511_i32_53 dim 1 : vector<8x512xf32>, i32 -> vector<8x512xf32>
    %c511_i32_54 = arith.constant 511 : i32
    %104 = tpu.dynamic_rotate %0 by %c511_i32_54 dim 1 : vector<8x512xf32>, i32 -> vector<8x512xf32>
    %c1_55 = arith.constant 1 : index
    %c0_56 = arith.constant 0 : index
    %105 = vector.load %arg11[%c1_55, %c0_56] : memref<4x512xf32, #tpu.memory_space<vmem>>, vector<1x512xf32>
    %106 = vector.broadcast %105 : vector<1x512xf32> to vector<8x512xf32>
    %107 = arith.mulf %103, %106 : vector<8x512xf32>
    %108 = vector.broadcast %105 : vector<1x512xf32> to vector<8x512xf32>
    %109 = arith.mulf %104, %108 : vector<8x512xf32>
    %c8_57 = arith.constant 8 : index
    %c0_58 = arith.constant 0 : index
    %110 = vector.load %arg14[%c8_57, %c0_58] : memref<64x512xf32, #tpu.memory_space<vmem>>, vector<8x512xf32>
    tpu.vector_store %arg14[%c8_57, %c0_58], %107 {strides = array<i32>} : memref<64x512xf32, #tpu.memory_space<vmem>>, vector<8x512xf32>,
    %c40_59 = arith.constant 40 : index
    %c0_60 = arith.constant 0 : index
    %111 = vector.load %arg14[%c40_59, %c0_60] : memref<64x512xf32, #tpu.memory_space<vmem>>, vector<8x512xf32>
    tpu.vector_store %arg14[%c40_59, %c0_60], %109 {strides = array<i32>} : memref<64x512xf32, #tpu.memory_space<vmem>>, vector<8x512xf32>,
    %c496_i32_61 = arith.constant 496 : i32
    %112 = tpu.dynamic_rotate %100 by %c496_i32_61 dim 1 : vector<8x512xf32>, i32 -> vector<8x512xf32>
    %c496_i32_62 = arith.constant 496 : i32
    %113 = tpu.dynamic_rotate %0 by %c496_i32_62 dim 1 : vector<8x512xf32>, i32 -> vector<8x512xf32>
    %c2_63 = arith.constant 2 : index
    %c0_64 = arith.constant 0 : index
    %114 = vector.load %arg11[%c2_63, %c0_64] : memref<4x512xf32, #tpu.memory_space<vmem>>, vector<1x512xf32>
    %115 = vector.broadcast %114 : vector<1x512xf32> to vector<8x512xf32>
    %116 = arith.mulf %112, %115 : vector<8x512xf32>
    %117 = vector.broadcast %114 : vector<1x512xf32> to vector<8x512xf32>
    %118 = arith.mulf %113, %117 : vector<8x512xf32>
    %c16_65 = arith.constant 16 : index
    %c0_66 = arith.constant 0 : index
    %119 = vector.load %arg14[%c16_65, %c0_66] : memref<64x512xf32, #tpu.memory_space<vmem>>, vector<8x512xf32>
    tpu.vector_store %arg14[%c16_65, %c0_66], %116 {strides = array<i32>} : memref<64x512xf32, #tpu.memory_space<vmem>>, vector<8x512xf32>,
    %c48_67 = arith.constant 48 : index
    %c0_68 = arith.constant 0 : index
    %120 = vector.load %arg14[%c48_67, %c0_68] : memref<64x512xf32, #tpu.memory_space<vmem>>, vector<8x512xf32>
    tpu.vector_store %arg14[%c48_67, %c0_68], %118 {strides = array<i32>} : memref<64x512xf32, #tpu.memory_space<vmem>>, vector<8x512xf32>,
    %c495_i32_69 = arith.constant 495 : i32
    %121 = tpu.dynamic_rotate %100 by %c495_i32_69 dim 1 : vector<8x512xf32>, i32 -> vector<8x512xf32>
    %c495_i32_70 = arith.constant 495 : i32
    %122 = tpu.dynamic_rotate %0 by %c495_i32_70 dim 1 : vector<8x512xf32>, i32 -> vector<8x512xf32>
    %c3_71 = arith.constant 3 : index
    %c0_72 = arith.constant 0 : index
    %123 = vector.load %arg11[%c3_71, %c0_72] : memref<4x512xf32, #tpu.memory_space<vmem>>, vector<1x512xf32>
    %124 = vector.broadcast %123 : vector<1x512xf32> to vector<8x512xf32>
    %125 = arith.mulf %121, %124 : vector<8x512xf32>
    %126 = vector.broadcast %123 : vector<1x512xf32> to vector<8x512xf32>
    %127 = arith.mulf %122, %126 : vector<8x512xf32>
    %c24_73 = arith.constant 24 : index
    %c0_74 = arith.constant 0 : index
    %128 = vector.load %arg14[%c24_73, %c0_74] : memref<64x512xf32, #tpu.memory_space<vmem>>, vector<8x512xf32>
    tpu.vector_store %arg14[%c24_73, %c0_74], %125 {strides = array<i32>} : memref<64x512xf32, #tpu.memory_space<vmem>>, vector<8x512xf32>,
    %c56_75 = arith.constant 56 : index
    %c0_76 = arith.constant 0 : index
    %129 = vector.load %arg14[%c56_75, %c0_76] : memref<64x512xf32, #tpu.memory_space<vmem>>, vector<8x512xf32>
    tpu.vector_store %arg14[%c56_75, %c0_76], %127 {strides = array<i32>} : memref<64x512xf32, #tpu.memory_space<vmem>>, vector<8x512xf32>,
    %c0_77 = arith.constant 0 : index
    %c0_78 = arith.constant 0 : index
    %130 = vector.load %arg9[%c0_77, %c0_78] : memref<16x64xbf16, #tpu.memory_space<vmem>>, vector<16x64xbf16>
    %c0_79 = arith.constant 0 : index
    %c0_80 = arith.constant 0 : index
    %131 = vector.load %arg14[%c0_79, %c0_80] : memref<64x512xf32, #tpu.memory_space<vmem>>, vector<64x512xf32>
    %132 = arith.truncf %131 : vector<64x512xf32> to vector<64x512xbf16>
    %cst_81 = arith.constant dense<0.000000e+00> : vector<16x512xf32>
    %133 = tpu.matmul %130, %132, %cst_81 {dimension_numbers = #tpu.dot_dimension_numbers<[1], [0], [0], [1], [0, 0, 1, 1], [], []>} : vector<16x64xbf16>, vector<64x512xbf16>, vector<16x512xf32> -> vector<16x512xf32>
    %c0_82 = arith.constant 0 : index
    %c0_83 = arith.constant 0 : index
    %134 = vector.load %arg10[%c0_82, %c0_83] : memref<16x1xf32, #tpu.memory_space<vmem>>, vector<16x1xf32>
    %135 = vector.broadcast %134 : vector<16x1xf32> to vector<16x512xf32>
    %136 = arith.addf %133, %135 : vector<16x512xf32>
    %c0_84 = arith.constant 0 : index
    %c0_85 = arith.constant 0 : index
    %137 = vector.load %arg12[%c0_84, %c0_85] : memref<16x512xf32, #tpu.memory_space<vmem>>, vector<16x512xf32>
    tpu.vector_store %arg12[%c0_84, %c0_85], %136 {strides = array<i32>} : memref<16x512xf32, #tpu.memory_space<vmem>>, vector<16x512xf32>,
    return
  }
  func.func @transform_0(%arg0: i32) -> (i32, i32) {
    %c0_i32 = arith.constant 0 : i32
    %c0_i32_0 = arith.constant 0 : i32
    %c0_i32_1 = arith.constant 0 : i32
    return %c0_i32, %c0_i32_0 : i32, i32
  }
  func.func @transform_1(%arg0: i32) -> (i32, i32) {
    %c0_i32 = arith.constant 0 : i32
    %c0_i32_0 = arith.constant 0 : i32
    %c0_i32_1 = arith.constant 0 : i32
    return %c0_i32, %c0_i32_0 : i32, i32
  }
  func.func @transform_2(%arg0: i32) -> (i32, i32) {
    %c0_i32 = arith.constant 0 : i32
    %c0_i32_0 = arith.constant 0 : i32
    %c0_i32_1 = arith.constant 0 : i32
    return %c0_i32, %c0_i32_0 : i32, i32
  }
  func.func @transform_3(%arg0: i32) -> (i32, i32) {
    %c0_i32 = arith.constant 0 : i32
    %c0_i32_0 = arith.constant 0 : i32
    %c0_i32_1 = arith.constant 0 : i32
    return %c0_i32, %c0_i32_0 : i32, i32
  }
  func.func @transform_4(%arg0: i32) -> (i32, i32) {
    %c0_i32 = arith.constant 0 : i32
    %c0_i32_0 = arith.constant 0 : i32
    %c0_i32_1 = arith.constant 0 : i32
    return %c0_i32, %c0_i32_0 : i32, i32
  }
  func.func @transform_5(%arg0: i32) -> (i32, i32) {
    %c0_i32 = arith.constant 0 : i32
    %c0_i32_0 = arith.constant 0 : i32
    %c0_i32_1 = arith.constant 0 : i32
    return %c0_i32, %c0_i32_0 : i32, i32
  }
  func.func @transform_6(%arg0: i32) -> (i32, i32) {
    %c0_i32 = arith.constant 0 : i32
    %c0_i32_0 = arith.constant 0 : i32
    %c0_i32_1 = arith.constant 0 : i32
    return %c0_i32, %c0_i32_0 : i32, i32
  }
  func.func @transform_7(%arg0: i32) -> (i32, i32) {
    %c0_i32 = arith.constant 0 : i32
    %c0_i32_0 = arith.constant 0 : i32
    %c0_i32_1 = arith.constant 0 : i32
    return %c0_i32, %c0_i32_0 : i32, i32
  }
  func.func @transform_8(%arg0: i32) -> (i32, i32) {
    %c0_i32 = arith.constant 0 : i32
    %c0_i32_0 = arith.constant 0 : i32
    %c0_i32_1 = arith.constant 0 : i32
    return %c0_i32, %c0_i32_0 : i32, i32
  }
  func.func @transform_9(%arg0: i32) -> (i32, i32) {
    %c0_i32 = arith.constant 0 : i32
    %c0_i32_0 = arith.constant 0 : i32
    %c0_i32_1 = arith.constant 0 : i32
    return %c0_i32, %c0_i32_0 : i32, i32
  }
  func.func @transform_10(%arg0: i32) -> (i32, i32) {
    %c0_i32 = arith.constant 0 : i32
    %c0_i32_0 = arith.constant 0 : i32
    %c0_i32_1 = arith.constant 0 : i32
    return %c0_i32, %c0_i32_0 : i32, i32
  }
  func.func @transform_11(%arg0: i32) -> (i32, i32) {
    %c0_i32 = arith.constant 0 : i32
    %c0_i32_0 = arith.constant 0 : i32
    %c0_i32_1 = arith.constant 0 : i32
    return %c0_i32, %c0_i32_0 : i32, i32
  }
}

</mosaic_0001>

<llo_original>
// kernel: res_block_decoder_forward.1
$region0: #{res_block_decoder_forward.1}
  #allocation0 [shape = 'u32[]', space=smem, size = 0x4, offset = 0x4, fixed_abs, tag = 'smem constant byte address 0x4 - core index']
  #allocation1 [shape = 'u32[144,128]{1,0:T(1,128)}', space=vmem, size = 0x12000, scoped, tag = 'internal scratch']
  #allocation2 [shape = 'f32[72,512]{1,0:T(8,128)}', space=vmem, size = 0x24000, scoped, tag = 'scratch operand']
  #allocation3 [shape = 'f32[64,512]{1,0:T(8,128)}', space=vmem, size = 0x20000, scoped, tag = 'scratch operand']
  %s0 = inlined_call_operand.vmem [shape: f32[8,512], index: 0, kind: input, shape index: {}]
  %s1 = inlined_call_operand.vmem [shape: f32[8,1], index: 1, kind: input, shape index: {}]
  %s2 = inlined_call_operand.vmem [shape: f32[8,1], index: 2, kind: input, shape index: {}]
  %s3 = inlined_call_operand.vmem [shape: f32[8,1], index: 3, kind: input, shape index: {}]
  %s4 = inlined_call_operand.vmem [shape: f32[8,1], index: 4, kind: input, shape index: {}]
  %s5 = inlined_call_operand.vmem [shape: bf16[8,72], index: 5, kind: input, shape index: {}]
  %s6 = inlined_call_operand.vmem [shape: f32[8,1], index: 6, kind: input, shape index: {}]
  %s7 = inlined_call_operand.vmem [shape: f32[9,512], index: 7, kind: input, shape index: {}]
  %s8 = inlined_call_operand.vmem [shape: bf16[16,64], index: 8, kind: input, shape index: {}]
  %s9 = inlined_call_operand.vmem [shape: f32[16,1], index: 9, kind: input, shape index: {}]
  %s10 = inlined_call_operand.vmem [shape: f32[4,512], index: 10, kind: input, shape index: {}]
  %s11 = inlined_call_operand.vmem [shape: f32[16,512], index: 11, kind: output, shape index: {}]
  %s12 = sld [smem:[#allocation0]]
  $region54: #{res_block_decoder_forward.1} parent=0
    _
  %s14 = ssub.s32 1, %s12
  %s15 = scalar_select 0, %s14, %s12
  // Predicated region
  $region2: #{res_block_decoder_forward.1} parent=0 // pred_check
    _
  $region3: #{res_block_decoder_forward.1} parent=0 // pred_check_branch
    %17 = sbr.rel (0) target = $region5
  $region4: #{res_block_decoder_forward.1} parent=0 // pred_region
    _
  $region5: #{res_block_decoder_forward.1} parent=0 // pred_fallthru
    _
  // Predicated region
  $region6: #{res_block_decoder_forward.1} parent=0 // pred_check
    _
  $region7: #{res_block_decoder_forward.1} parent=0 // pred_check_branch
    %19 = sbr.rel (0) target = $region9
  $region8: #{res_block_decoder_forward.1} parent=0 // pred_region
    _
  $region9: #{res_block_decoder_forward.1} parent=0 // pred_fallthru
    _
  // Predicated region
  $region10: #{res_block_decoder_forward.1} parent=0 // pred_check
    _
  $region11: #{res_block_decoder_forward.1} parent=0 // pred_check_branch
    %21 = sbr.rel (0) target = $region13
  $region12: #{res_block_decoder_forward.1} parent=0 // pred_region
    _
  $region13: #{res_block_decoder_forward.1} parent=0 // pred_fallthru
    _
  // Predicated region
  $region14: #{res_block_decoder_forward.1} parent=0 // pred_check
    _
  $region15: #{res_block_decoder_forward.1} parent=0 // pred_check_branch
    %23 = sbr.rel (0) target = $region17
  $region16: #{res_block_decoder_forward.1} parent=0 // pred_region
    _
  $region17: #{res_block_decoder_forward.1} parent=0 // pred_fallthru
    _
  // Predicated region
  $region18: #{res_block_decoder_forward.1} parent=0 // pred_check
    _
  $region19: #{res_block_decoder_forward.1} parent=0 // pred_check_branch
    %25 = sbr.rel (0) target = $region21
  $region20: #{res_block_decoder_forward.1} parent=0 // pred_region
    _
  $region21: #{res_block_decoder_forward.1} parent=0 // pred_fallthru
    _
  // Predicated region
  $region22: #{res_block_decoder_forward.1} parent=0 // pred_check
    _
  $region23: #{res_block_decoder_forward.1} parent=0 // pred_check_branch
    %27 = sbr.rel (0) target = $region25
  $region24: #{res_block_decoder_forward.1} parent=0 // pred_region
    _
  $region25: #{res_block_decoder_forward.1} parent=0 // pred_fallthru
    _
  // Predicated region
  $region26: #{res_block_decoder_forward.1} parent=0 // pred_check
    _
  $region27: #{res_block_decoder_forward.1} parent=0 // pred_check_branch
    %29 = sbr.rel (0) target = $region29
  $region28: #{res_block_decoder_forward.1} parent=0 // pred_region
    _
  $region29: #{res_block_decoder_forward.1} parent=0 // pred_fallthru
    _
  // Predicated region
  $region30: #{res_block_decoder_forward.1} parent=0 // pred_check
    _
  $region31: #{res_block_decoder_forward.1} parent=0 // pred_check_branch
    %31 = sbr.rel (0) target = $region33
  $region32: #{res_block_decoder_forward.1} parent=0 // pred_region
    _
  $region33: #{res_block_decoder_forward.1} parent=0 // pred_fallthru
    _
  // Predicated region
  $region34: #{res_block_decoder_forward.1} parent=0 // pred_check
    _
  $region35: #{res_block_decoder_forward.1} parent=0 // pred_check_branch
    %33 = sbr.rel (0) target = $region37
  $region36: #{res_block_decoder_forward.1} parent=0 // pred_region
    _
  $region37: #{res_block_decoder_forward.1} parent=0 // pred_fallthru
    _
  // Predicated region
  $region38: #{res_block_decoder_forward.1} parent=0 // pred_check
    _
  $region39: #{res_block_decoder_forward.1} parent=0 // pred_check_branch
    %35 = sbr.rel (0) target = $region41
  $region40: #{res_block_decoder_forward.1} parent=0 // pred_region
    _
  $region41: #{res_block_decoder_forward.1} parent=0 // pred_fallthru
    _
  // Predicated region
  $region42: #{res_block_decoder_forward.1} parent=0 // pred_check
    _
  $region43: #{res_block_decoder_forward.1} parent=0 // pred_check_branch
    %37 = sbr.rel (0) target = $region45
  $region44: #{res_block_decoder_forward.1} parent=0 // pred_region
    _
  $region45: #{res_block_decoder_forward.1} parent=0 // pred_fallthru
    _
  %v39 = vld [vmem:[%s0] sm:$0xff]
  %v40 = vld [vmem:[%s0 + $0x8] sm:$0xff]
  %v41 = vld [vmem:[%s0 + $0x10] sm:$0xff]
  %v42 = vld [vmem:[%s0 + $0x18] sm:$0xff]
  %v43 = vadd.f32 %v39, %v40
  %v44 = vadd.f32 %v43, %v41
  %v45 = vadd.f32 %v44, %v42
  %46 = vadd.xlane.f32.xlu0 %v45
  %v47 = vpop.xlane.xlu0 %46
  %v48 = vmul.f32 %v47, 0.001953125
  %v49 = vsub.f32 %v39, %v48
  %v50 = vsub.f32 %v40, %v48
  %v51 = vsub.f32 %v41, %v48
  %v52 = vsub.f32 %v42, %v48
  %v53 = vmul.f32 %v49, %v49
  %v54 = vmul.f32 %v50, %v50
  %v55 = vmul.f32 %v51, %v51
  %v56 = vmul.f32 %v52, %v52
  %v57 = vadd.f32 %v53, %v54
  %v58 = vadd.f32 %v57, %v55
  %v59 = vadd.f32 %v58, %v56
  %60 = vadd.xlane.f32.xlu0 %v59
  %v61 = vpop.xlane.xlu0 %60
  %v62 = vmul.f32 %v61, 0.001953125
  %v63 = vld [vmem:[%s1] sm:$0xff]
  %v64 = vadd.f32 %v62, 1e-05
  %v65 = vrsqrt.pop %v64
  %v66 = vmul.f32 %v63, %v65
  %68 = vset.pattern.permute.xlu0 0
  %69 = vperm.xlu0 %68, %v66
  %v70 = vpop.permute.xlu0 %69
  %v72 = vmul.f32 %v49, %v70
  %v73 = vmul.f32 %v50, %v70
  %v74 = vmul.f32 %v51, %v70
  %v75 = vmul.f32 %v52, %v70
  %v76 = vld [vmem:[%s2] sm:$0xff]
  %78 = vset.pattern.permute.xlu0 0
  %79 = vperm.xlu0 %78, %v76
  %v80 = vpop.permute.xlu0 %79
  %v82 = vadd.f32 %v72, %v80
  %v83 = vadd.f32 %v73, %v80
  %v84 = vadd.f32 %v74, %v80
  %v85 = vadd.f32 %v75, %v80
  %vm86 = vcmp.ge.f32.partialorder %v82, 0.0
  %vm87 = vcmp.ge.f32.partialorder %v83, 0.0
  %vm88 = vcmp.ge.f32.partialorder %v84, 0.0
  %vm89 = vcmp.ge.f32.partialorder %v85, 0.0
  %v90 = vmul.f32 %v82, 0.01
  %v91 = vmul.f32 %v83, 0.01
  %v92 = vmul.f32 %v84, 0.01
  %v93 = vmul.f32 %v85, 0.01
  %v94 = vsel %vm86, %v82, %v90
  %v95 = vsel %vm87, %v83, %v91
  %v96 = vsel %vm88, %v84, %v92
  %v97 = vsel %vm89, %v85, %v93
  %98 = vrot.lane.b32.xlu0 %v94, 17
  %v99 = vpop.permute.xlu0 %98
  %100 = vrot.lane.b32.xlu0 %v95, 17
  %v101 = vpop.permute.xlu0 %100
  %102 = vrot.lane.b32.xlu0 %v96, 17
  %v103 = vpop.permute.xlu0 %102
  %104 = vrot.lane.b32.xlu0 %v97, 17
  %v105 = vpop.permute.xlu0 %104
  %v106 = vlaneseq
  %v107 = vand.u32 %v106, 127
  %vm108 = vcmp.lt.s32.totalorder %v107, 17
  %v109 = vsel %vm108, %v103, %v105
  %v110 = vsel %vm108, %v101, %v103
  %v111 = vsel %vm108, %v99, %v101
  %v112 = vsel %vm108, %v105, %v99
  %v113 = vld [vmem:[%s7] ss:$8 sm:$0xf]
  %v115 = vlaneseq
  %v116 = vshrl.u32 %v115, 7
  %v117 = vsub.s32 0, %v116
  %v118 = vrot.slane %v113, %v117
  %v119 = vlaneseq
  %v120 = vshrl.u32 %v119, 7
  %v121 = vsub.s32 1, %v120
  %v122 = vrot.slane %v113, %v121
  %v123 = vlaneseq
  %v124 = vshrl.u32 %v123, 7
  %v125 = vsub.s32 2, %v124
  %v126 = vrot.slane %v113, %v125
  %v127 = vlaneseq
  %v128 = vshrl.u32 %v127, 7
  %v129 = vsub.s32 3, %v128
  %v130 = vrot.slane %v113, %v129
  %v135 = vmul.f32 %v112, %v118
  %v136 = vmul.f32 %v111, %v122
  %v137 = vmul.f32 %v110, %v126
  %v138 = vmul.f32 %v109, %v130
  %139 = vst [vmem:[#allocation2] sm:$0xff] %v135
  %140 = vst [vmem:[#allocation2 + $0x8] sm:$0xff] %v136
  %141 = vst [vmem:[#allocation2 + $0x10] sm:$0xff] %v137
  %142 = vst [vmem:[#allocation2 + $0x18] sm:$0xff] %v138
  %143 = vrot.lane.b32.xlu0 %v94, 16
  %v144 = vpop.permute.xlu0 %143
  %145 = vrot.lane.b32.xlu0 %v95, 16
  %v146 = vpop.permute.xlu0 %145
  %147 = vrot.lane.b32.xlu0 %v96, 16
  %v148 = vpop.permute.xlu0 %147
  %149 = vrot.lane.b32.xlu0 %v97, 16
  %v150 = vpop.permute.xlu0 %149
  %vm151 = vcmp.lt.s32.totalorder %v107, 16
  %v152 = vsel %vm151, %v148, %v150
  %v153 = vsel %vm151, %v146, %v148
  %v154 = vsel %vm151, %v144, %v146
  %v155 = vsel %vm151, %v150, %v144
  %s156 = scalar_lea.vmem %s7, 1
  %v157 = vld [vmem:[%s156] ss:$8 sm:$0xf]
  %v159 = vlaneseq
  %v160 = vshrl.u32 %v159, 7
  %v161 = vsub.s32 0, %v160
  %v162 = vrot.slane %v157, %v161
  %v163 = vlaneseq
  %v164 = vshrl.u32 %v163, 7
  %v165 = vsub.s32 1, %v164
  %v166 = vrot.slane %v157, %v165
  %v167 = vlaneseq
  %v168 = vshrl.u32 %v167, 7
  %v169 = vsub.s32 2, %v168
  %v170 = vrot.slane %v157, %v169
  %v171 = vlaneseq
  %v172 = vshrl.u32 %v171, 7
  %v173 = vsub.s32 3, %v172
  %v174 = vrot.slane %v157, %v173
  %v179 = vmul.f32 %v155, %v162
  %v180 = vmul.f32 %v154, %v166
  %v181 = vmul.f32 %v153, %v170
  %v182 = vmul.f32 %v152, %v174
  %183 = vst [vmem:[#allocation2 + $0x20] sm:$0xff] %v179
  %184 = vst [vmem:[#allocation2 + $0x28] sm:$0xff] %v180
  %185 = vst [vmem:[#allocation2 + $0x30] sm:$0xff] %v181
  %186 = vst [vmem:[#allocation2 + $0x38] sm:$0xff] %v182
  %187 = vrot.lane.b32.xlu0 %v94, 15
  %v188 = vpop.permute.xlu0 %187
  %189 = vrot.lane.b32.xlu0 %v95, 15
  %v190 = vpop.permute.xlu0 %189
  %191 = vrot.lane.b32.xlu0 %v96, 15
  %v192 = vpop.permute.xlu0 %191
  %193 = vrot.lane.b32.xlu0 %v97, 15
  %v194 = vpop.permute.xlu0 %193
  %vm195 = vcmp.lt.s32.totalorder %v107, 15
  %v196 = vsel %vm195, %v192, %v194
  %v197 = vsel %vm195, %v190, %v192
  %v198 = vsel %vm195, %v188, %v190
  %v199 = vsel %vm195, %v194, %v188
  %s200 = scalar_lea.vmem %s7, 2
  %v201 = vld [vmem:[%s200] ss:$8 sm:$0xf]
  %v203 = vlaneseq
  %v204 = vshrl.u32 %v203, 7
  %v205 = vsub.s32 0, %v204
  %v206 = vrot.slane %v201, %v205
  %v207 = vlaneseq
  %v208 = vshrl.u32 %v207, 7
  %v209 = vsub.s32 1, %v208
  %v210 = vrot.slane %v201, %v209
  %v211 = vlaneseq
  %v212 = vshrl.u32 %v211, 7
  %v213 = vsub.s32 2, %v212
  %v214 = vrot.slane %v201, %v213
  %v215 = vlaneseq
  %v216 = vshrl.u32 %v215, 7
  %v217 = vsub.s32 3, %v216
  %v218 = vrot.slane %v201, %v217
  %v223 = vmul.f32 %v199, %v206
  %v224 = vmul.f32 %v198, %v210
  %v225 = vmul.f32 %v197, %v214
  %v226 = vmul.f32 %v196, %v218
  %227 = vst [vmem:[#allocation2 + $0x40] sm:$0xff] %v223
  %228 = vst [vmem:[#allocation2 + $0x48] sm:$0xff] %v224
  %229 = vst [vmem:[#allocation2 + $0x50] sm:$0xff] %v225
  %230 = vst [vmem:[#allocation2 + $0x58] sm:$0xff] %v226
  %231 = vrot.lane.b32.xlu0 %v94, 1
  %v232 = vpop.permute.xlu0 %231
  %233 = vrot.lane.b32.xlu0 %v95, 1
  %v234 = vpop.permute.xlu0 %233
  %235 = vrot.lane.b32.xlu0 %v96, 1
  %v236 = vpop.permute.xlu0 %235
  %237 = vrot.lane.b32.xlu0 %v97, 1
  %v238 = vpop.permute.xlu0 %237
  %vm239 = vcmp.lt.s32.totalorder %v107, 1
  %v240 = vsel %vm239, %v236, %v238
  %v241 = vsel %vm239, %v234, %v236
  %v242 = vsel %vm239, %v232, %v234
  %v243 = vsel %vm239, %v238, %v232
  %s244 = scalar_lea.vmem %s7, 3
  %v245 = vld [vmem:[%s244] ss:$8 sm:$0xf]
  %v247 = vlaneseq
  %v248 = vshrl.u32 %v247, 7
  %v249 = vsub.s32 0, %v248
  %v250 = vrot.slane %v245, %v249
  %v251 = vlaneseq
  %v252 = vshrl.u32 %v251, 7
  %v253 = vsub.s32 1, %v252
  %v254 = vrot.slane %v245, %v253
  %v255 = vlaneseq
  %v256 = vshrl.u32 %v255, 7
  %v257 = vsub.s32 2, %v256
  %v258 = vrot.slane %v245, %v257
  %v259 = vlaneseq
  %v260 = vshrl.u32 %v259, 7
  %v261 = vsub.s32 3, %v260
  %v262 = vrot.slane %v245, %v261
  %v267 = vmul.f32 %v243, %v250
  %v268 = vmul.f32 %v242, %v254
  %v269 = vmul.f32 %v241, %v258
  %v270 = vmul.f32 %v240, %v262
  %271 = vst [vmem:[#allocation2 + $0x60] sm:$0xff] %v267
  %272 = vst [vmem:[#allocation2 + $0x68] sm:$0xff] %v268
  %273 = vst [vmem:[#allocation2 + $0x70] sm:$0xff] %v269
  %274 = vst [vmem:[#allocation2 + $0x78] sm:$0xff] %v270
  %275 = vst [vmem:[#allocation2 + $0x80] sm:$0xff] %v94
  %276 = vst [vmem:[#allocation2 + $0x88] sm:$0xff] %v95
  %277 = vst [vmem:[#allocation2 + $0x90] sm:$0xff] %v96
  %278 = vst [vmem:[#allocation2 + $0x98] sm:$0xff] %v97
  %279 = vrot.lane.b32.xlu0 %v94, 127
  %v280 = vpop.permute.xlu0 %279
  %281 = vrot.lane.b32.xlu0 %v95, 127
  %v282 = vpop.permute.xlu0 %281
  %283 = vrot.lane.b32.xlu0 %v96, 127
  %v284 = vpop.permute.xlu0 %283
  %285 = vrot.lane.b32.xlu0 %v97, 127
  %v286 = vpop.permute.xlu0 %285
  %vm287 = vcmp.lt.s32.totalorder %v107, 127
  %v288 = vsel %vm287, %v284, %v286
  %v289 = vsel %vm287, %v282, %v284
  %v290 = vsel %vm287, %v280, %v282
  %v291 = vsel %vm287, %v286, %v280
  %s292 = scalar_lea.vmem %s7, 5
  %v293 = vld [vmem:[%s292] ss:$8 sm:$0xf]
  %v295 = vlaneseq
  %v296 = vshrl.u32 %v295, 7
  %v297 = vsub.s32 0, %v296
  %v298 = vrot.slane %v293, %v297
  %v299 = vlaneseq
  %v300 = vshrl.u32 %v299, 7
  %v301 = vsub.s32 1, %v300
  %v302 = vrot.slane %v293, %v301
  %v303 = vlaneseq
  %v304 = vshrl.u32 %v303, 7
  %v305 = vsub.s32 2, %v304
  %v306 = vrot.slane %v293, %v305
  %v307 = vlaneseq
  %v308 = vshrl.u32 %v307, 7
  %v309 = vsub.s32 3, %v308
  %v310 = vrot.slane %v293, %v309
  %v315 = vmul.f32 %v290, %v298
  %v316 = vmul.f32 %v289, %v302
  %v317 = vmul.f32 %v288, %v306
  %v318 = vmul.f32 %v291, %v310
  %319 = vst [vmem:[#allocation2 + $0xa0] sm:$0xff] %v315
  %320 = vst [vmem:[#allocation2 + $0xa8] sm:$0xff] %v316
  %321 = vst [vmem:[#allocation2 + $0xb0] sm:$0xff] %v317
  %322 = vst [vmem:[#allocation2 + $0xb8] sm:$0xff] %v318
  %323 = vrot.lane.b32.xlu0 %v94, 113
  %v324 = vpop.permute.xlu0 %323
  %325 = vrot.lane.b32.xlu0 %v95, 113
  %v326 = vpop.permute.xlu0 %325
  %327 = vrot.lane.b32.xlu0 %v96, 113
  %v328 = vpop.permute.xlu0 %327
  %329 = vrot.lane.b32.xlu0 %v97, 113
  %v330 = vpop.permute.xlu0 %329
  %vm331 = vcmp.lt.s32.totalorder %v107, 113
  %v332 = vsel %vm331, %v328, %v330
  %v333 = vsel %vm331, %v326, %v328
  %v334 = vsel %vm331, %v324, %v326
  %v335 = vsel %vm331, %v330, %v324
  %s336 = scalar_lea.vmem %s7, 6
  %v337 = vld [vmem:[%s336] ss:$8 sm:$0xf]
  %v339 = vlaneseq
  %v340 = vshrl.u32 %v339, 7
  %v341 = vsub.s32 0, %v340
  %v342 = vrot.slane %v337, %v341
  %v343 = vlaneseq
  %v344 = vshrl.u32 %v343, 7
  %v345 = vsub.s32 1, %v344
  %v346 = vrot.slane %v337, %v345
  %v347 = vlaneseq
  %v348 = vshrl.u32 %v347, 7
  %v349 = vsub.s32 2, %v348
  %v350 = vrot.slane %v337, %v349
  %v351 = vlaneseq
  %v352 = vshrl.u32 %v351, 7
  %v353 = vsub.s32 3, %v352
  %v354 = vrot.slane %v337, %v353
  %v359 = vmul.f32 %v334, %v342
  %v360 = vmul.f32 %v333, %v346
  %v361 = vmul.f32 %v332, %v350
  %v362 = vmul.f32 %v335, %v354
  %363 = vst [vmem:[#allocation2 + $0xc0] sm:$0xff] %v359
  %364 = vst [vmem:[#allocation2 + $0xc8] sm:$0xff] %v360
  %365 = vst [vmem:[#allocation2 + $0xd0] sm:$0xff] %v361
  %366 = vst [vmem:[#allocation2 + $0xd8] sm:$0xff] %v362
  %367 = vrot.lane.b32.xlu0 %v94, 112
  %v368 = vpop.permute.xlu0 %367
  %369 = vrot.lane.b32.xlu0 %v95, 112
  %v370 = vpop.permute.xlu0 %369
  %371 = vrot.lane.b32.xlu0 %v96, 112
  %v372 = vpop.permute.xlu0 %371
  %373 = vrot.lane.b32.xlu0 %v97, 112
  %v374 = vpop.permute.xlu0 %373
  %vm375 = vcmp.lt.s32.totalorder %v107, 112
  %v376 = vsel %vm375, %v372, %v374
  %v377 = vsel %vm375, %v370, %v372
  %v378 = vsel %vm375, %v368, %v370
  %v379 = vsel %vm375, %v374, %v368
  %s380 = scalar_lea.vmem %s7, 7
  %v381 = vld [vmem:[%s380] ss:$8 sm:$0xf]
  %v383 = vlaneseq
  %v384 = vshrl.u32 %v383, 7
  %v385 = vsub.s32 0, %v384
  %v386 = vrot.slane %v381, %v385
  %v387 = vlaneseq
  %v388 = vshrl.u32 %v387, 7
  %v389 = vsub.s32 1, %v388
  %v390 = vrot.slane %v381, %v389
  %v391 = vlaneseq
  %v392 = vshrl.u32 %v391, 7
  %v393 = vsub.s32 2, %v392
  %v394 = vrot.slane %v381, %v393
  %v395 = vlaneseq
  %v396 = vshrl.u32 %v395, 7
  %v397 = vsub.s32 3, %v396
  %v398 = vrot.slane %v381, %v397
  %v403 = vmul.f32 %v378, %v386
  %v404 = vmul.f32 %v377, %v390
  %v405 = vmul.f32 %v376, %v394
  %v406 = vmul.f32 %v379, %v398
  %407 = vst [vmem:[#allocation2 + $0xe0] sm:$0xff] %v403
  %408 = vst [vmem:[#allocation2 + $0xe8] sm:$0xff] %v404
  %409 = vst [vmem:[#allocation2 + $0xf0] sm:$0xff] %v405
  %410 = vst [vmem:[#allocation2 + $0xf8] sm:$0xff] %v406
  %411 = vrot.lane.b32.xlu0 %v94, 111
  %v412 = vpop.permute.xlu0 %411
  %413 = vrot.lane.b32.xlu0 %v95, 111
  %v414 = vpop.permute.xlu0 %413
  %415 = vrot.lane.b32.xlu0 %v96, 111
  %v416 = vpop.permute.xlu0 %415
  %417 = vrot.lane.b32.xlu0 %v97, 111
  %v418 = vpop.permute.xlu0 %417
  %vm419 = vcmp.lt.s32.totalorder %v107, 111
  %v420 = vsel %vm419, %v416, %v418
  %v421 = vsel %vm419, %v414, %v416
  %v422 = vsel %vm419, %v412, %v414
  %v423 = vsel %vm419, %v418, %v412
  %s424 = scalar_lea.vmem %s7, 32
  %v425 = vld [vmem:[%s424] ss:$8 sm:$0xf]
  %v427 = vlaneseq
  %v428 = vshrl.u32 %v427, 7
  %v429 = vsub.s32 0, %v428
  %v430 = vrot.slane %v425, %v429
  %v431 = vlaneseq
  %v432 = vshrl.u32 %v431, 7
  %v433 = vsub.s32 1, %v432
  %v434 = vrot.slane %v425, %v433
  %v435 = vlaneseq
  %v436 = vshrl.u32 %v435, 7
  %v437 = vsub.s32 2, %v436
  %v438 = vrot.slane %v425, %v437
  %v439 = vlaneseq
  %v440 = vshrl.u32 %v439, 7
  %v441 = vsub.s32 3, %v440
  %v442 = vrot.slane %v425, %v441
  %v447 = vmul.f32 %v422, %v430
  %v448 = vmul.f32 %v421, %v434
  %v449 = vmul.f32 %v420, %v438
  %v450 = vmul.f32 %v423, %v442
  %451 = vst [vmem:[#allocation2 + $0x100] sm:$0xff] %v447
  %452 = vst [vmem:[#allocation2 + $0x108] sm:$0xff] %v448
  %453 = vst [vmem:[#allocation2 + $0x110] sm:$0xff] %v449
  %454 = vst [vmem:[#allocation2 + $0x118] sm:$0xff] %v450
  %v455 = vld [vmem:[%s5] sm:$0xf]
  %v456 = vld [vmem:[#allocation2] sm:$0xff]
  %v457 = vld [vmem:[#allocation2 + $0x8] sm:$0xff]
  %v458 = vld [vmem:[#allocation2 + $0x10] sm:$0xff]
  %v459 = vld [vmem:[#allocation2 + $0x18] sm:$0xff]
  %v460 = vld [vmem:[#allocation2 + $0x20] sm:$0xff]
  %v461 = vld [vmem:[#allocation2 + $0x28] sm:$0xff]
  %v462 = vld [vmem:[#allocation2 + $0x30] sm:$0xff]
  %v463 = vld [vmem:[#allocation2 + $0x38] sm:$0xff]
  %v464 = vld [vmem:[#allocation2 + $0x40] sm:$0xff]
  %v465 = vld [vmem:[#allocation2 + $0x48] sm:$0xff]
  %v466 = vld [vmem:[#allocation2 + $0x50] sm:$0xff]
  %v467 = vld [vmem:[#allocation2 + $0x58] sm:$0xff]
  %v468 = vld [vmem:[#allocation2 + $0x60] sm:$0xff]
  %v469 = vld [vmem:[#allocation2 + $0x68] sm:$0xff]
  %v470 = vld [vmem:[#allocation2 + $0x70] sm:$0xff]
  %v471 = vld [vmem:[#allocation2 + $0x78] sm:$0xff]
  %v472 = vld [vmem:[#allocation2 + $0x80] sm:$0xff]
  %v473 = vld [vmem:[#allocation2 + $0x88] sm:$0xff]
  %v474 = vld [vmem:[#allocation2 + $0x90] sm:$0xff]
  %v475 = vld [vmem:[#allocation2 + $0x98] sm:$0xff]
  %v476 = vld [vmem:[#allocation2 + $0xa0] sm:$0xff]
  %v477 = vld [vmem:[#allocation2 + $0xa8] sm:$0xff]
  %v478 = vld [vmem:[#allocation2 + $0xb0] sm:$0xff]
  %v479 = vld [vmem:[#allocation2 + $0xb8] sm:$0xff]
  %v480 = vld [vmem:[#allocation2 + $0xc0] sm:$0xff]
  %v481 = vld [vmem:[#allocation2 + $0xc8] sm:$0xff]
  %v482 = vld [vmem:[#allocation2 + $0xd0] sm:$0xff]
  %v483 = vld [vmem:[#allocation2 + $0xd8] sm:$0xff]
  %v484 = vld [vmem:[#allocation2 + $0xe0] sm:$0xff]
  %v485 = vld [vmem:[#allocation2 + $0xe8] sm:$0xff]
  %v486 = vld [vmem:[#allocation2 + $0xf0] sm:$0xff]
  %v487 = vld [vmem:[#allocation2 + $0xf8] sm:$0xff]
  %v488 = vld [vmem:[#allocation2 + $0x100] sm:$0xff]
  %v489 = vld [vmem:[#allocation2 + $0x108] sm:$0xff]
  %v490 = vld [vmem:[#allocation2 + $0x110] sm:$0xff]
  %v491 = vld [vmem:[#allocation2 + $0x118] sm:$0xff]
  %v492 = vpack.c.bf16 %v460, %v456
  %v493 = vpack.c.bf16 %v461, %v457
  %v494 = vpack.c.bf16 %v462, %v458
  %v495 = vpack.c.bf16 %v463, %v459
  %v496 = vpack.c.bf16 %v468, %v464
  %v497 = vpack.c.bf16 %v469, %v465
  %v498 = vpack.c.bf16 %v470, %v466
  %v499 = vpack.c.bf16 %v471, %v467
  %v500 = vpack.c.bf16 %v476, %v472
  %v501 = vpack.c.bf16 %v477, %v473
  %v502 = vpack.c.bf16 %v478, %v474
  %v503 = vpack.c.bf16 %v479, %v475
  %v504 = vpack.c.bf16 %v484, %v480
  %v505 = vpack.c.bf16 %v485, %v481
  %v506 = vpack.c.bf16 %v486, %v482
  %v507 = vpack.c.bf16 %v487, %v483
  %v508 = vpack.c.bf16 %v488, %v488
  %v509 = vpack.c.bf16 %v489, %v489
  %v510 = vpack.c.bf16 %v490, %v490
  %v511 = vpack.c.bf16 %v491, %v491
  %v512 = vld [vmem:[%s6] sm:$0xff]
  %514 = vset.pattern.permute.xlu0 0
  %515 = vperm.xlu0 %514, %v512
  %v516 = vpop.permute.xlu0 %515
  %vm518 = vcmask 588800
  %v520 = vsel %vm518, %v455, 0
  %vm522 = vcmask 1043456
  %v524 = vsel %vm522, %v508, 0
  %v527 = vsel %vm522, %v509, 0
  %v530 = vsel %vm522, %v510, 0
  %v533 = vsel %vm522, %v511, 0
  %535 = vmatprep.subr.bf16.mxu0 0
  %536 = vmatpush1.bf16.msra.mxu0 0
  %537 = vmatprep.subr.bf16.mxu0 0
  %538 = vmatpush1.bf16.msra.mxu0 0
  %539 = vmatprep.subr.bf16.mxu0 0
  %540 = vmatpush1.bf16.msra.mxu0 0
  %541 = vmatprep.subr.bf16.mxu0 %v527
  %542 = vmatpush1.bf16.msra.mxu0 %v524
  %543 = vmatprep.subr.bf16.mxu0 %v505
  %544 = vmatpush1.bf16.msra.mxu0 %v504
  %545 = vmatprep.subr.bf16.mxu0 %v501
  %546 = vmatpush1.bf16.msra.mxu0 %v500
  %547 = vmatprep.subr.bf16.mxu0 %v497
  %548 = vmatpush1.bf16.msra.mxu0 %v496
  %549 = vmatprep.subr.bf16.mxu0 %v493
  %550 = vmatpush1.bf16.msra.mxu0 %v492
  %551 = vmatprep.subr.bf16.mxu0 0
  %552 = vmatpush2.bf16.msra.mxu0 0
  %553 = vmatprep.subr.bf16.mxu0 0
  %554 = vmatpush2.bf16.msra.mxu0 0
  %555 = vmatprep.subr.bf16.mxu0 0
  %556 = vmatpush2.bf16.msra.mxu0 0
  %557 = vmatprep.subr.bf16.mxu0 0
  %558 = vmatpush2.bf16.msra.mxu0 0
  %559 = vmatprep.subr.bf16.mxu0 0
  %560 = vmatpush2.bf16.msra.mxu0 0
  %561 = vmatprep.subr.bf16.mxu0 0
  %562 = vmatpush2.bf16.msra.mxu0 0
  %563 = vmatprep.subr.bf16.mxu0 0
  %564 = vmatpush2.bf16.msra.mxu0 0
  %565 = vmatprep.subr.bf16.mxu0 0
  %566 = vmatpush2.bf16.msra.mxu0 0
  %567 = vmatprep.mubr.bf16.mxu0 0
  %568 = vmatmul.mubr.bf16.gmra.mxu0 %v520
  %v569 = vpop.f32.mrf.mxu0
  %v570 = vadd.f32 %v516, %v569
  %v571 = vpop.f32.mrf.mxu0
  %v572 = vadd.f32 %v516, %v571
  %v573 = vpop.f32.mrf.mxu0
  %v574 = vpop.f32.mrf.mxu0
  %575 = vdwg.mxu0
  %576 = vmatprep.subr.bf16.mxu0 0
  %577 = vmatpush1.bf16.msra.mxu0 0
  %578 = vmatprep.subr.bf16.mxu0 0
  %579 = vmatpush1.bf16.msra.mxu0 0
  %580 = vmatprep.subr.bf16.mxu0 0
  %581 = vmatpush1.bf16.msra.mxu0 0
  %582 = vmatprep.subr.bf16.mxu0 %v533
  %583 = vmatpush1.bf16.msra.mxu0 %v530
  %584 = vmatprep.subr.bf16.mxu0 %v507
  %585 = vmatpush1.bf16.msra.mxu0 %v506
  %586 = vmatprep.subr.bf16.mxu0 %v503
  %587 = vmatpush1.bf16.msra.mxu0 %v502
  %588 = vmatprep.subr.bf16.mxu0 %v499
  %589 = vmatpush1.bf16.msra.mxu0 %v498
  %590 = vmatprep.subr.bf16.mxu0 %v495
  %591 = vmatpush1.bf16.msra.mxu0 %v494
  %592 = vmatprep.subr.bf16.mxu0 0
  %593 = vmatpush2.bf16.msra.mxu0 0
  %594 = vmatprep.subr.bf16.mxu0 0
  %595 = vmatpush2.bf16.msra.mxu0 0
  %596 = vmatprep.subr.bf16.mxu0 0
  %597 = vmatpush2.bf16.msra.mxu0 0
  %598 = vmatprep.subr.bf16.mxu0 0
  %599 = vmatpush2.bf16.msra.mxu0 0
  %600 = vmatprep.subr.bf16.mxu0 0
  %601 = vmatpush2.bf16.msra.mxu0 0
  %602 = vmatprep.subr.bf16.mxu0 0
  %603 = vmatpush2.bf16.msra.mxu0 0
  %604 = vmatprep.subr.bf16.mxu0 0
  %605 = vmatpush2.bf16.msra.mxu0 0
  %606 = vmatprep.subr.bf16.mxu0 0
  %607 = vmatpush2.bf16.msra.mxu0 0
  %608 = vmatprep.mubr.bf16.mxu0 0
  %609 = vmatmul.mubr.bf16.gmra.mxu0 %v520
  %v610 = vpop.f32.mrf.mxu0
  %v611 = vadd.f32 %v516, %v610
  %v612 = vpop.f32.mrf.mxu0
  %v613 = vadd.f32 %v516, %v612
  %v614 = vpop.f32.mrf.mxu0
  %v615 = vpop.f32.mrf.mxu0
  %616 = vdwg.mxu0
  %v617 = vadd.f32 %v570, %v572
  %v618 = vadd.f32 %v617, %v611
  %v619 = vadd.f32 %v618, %v613
  %620 = vadd.xlane.f32.xlu0 %v619
  %v621 = vpop.xlane.xlu0 %620
  %v622 = vmul.f32 %v621, 0.001953125
  %v623 = vsub.f32 %v570, %v622
  %v624 = vsub.f32 %v572, %v622
  %v625 = vsub.f32 %v611, %v622
  %v626 = vsub.f32 %v613, %v622
  %v627 = vmul.f32 %v623, %v623
  %v628 = vmul.f32 %v624, %v624
  %v629 = vmul.f32 %v625, %v625
  %v630 = vmul.f32 %v626, %v626
  %v631 = vadd.f32 %v627, %v628
  %v632 = vadd.f32 %v631, %v629
  %v633 = vadd.f32 %v632, %v630
  %634 = vadd.xlane.f32.xlu0 %v633
  %v635 = vpop.xlane.xlu0 %634
  %v636 = vmul.f32 %v635, 0.001953125
  %v637 = vld [vmem:[%s3] sm:$0xff]
  %v638 = vadd.f32 %v636, 1e-05
  %v639 = vrsqrt.pop %v638
  %v640 = vmul.f32 %v637, %v639
  %642 = vset.pattern.permute.xlu0 0
  %643 = vperm.xlu0 %642, %v640
  %v644 = vpop.permute.xlu0 %643
  %v646 = vmul.f32 %v623, %v644
  %v647 = vmul.f32 %v624, %v644
  %v648 = vmul.f32 %v625, %v644
  %v649 = vmul.f32 %v626, %v644
  %v650 = vld [vmem:[%s4] sm:$0xff]
  %652 = vset.pattern.permute.xlu0 0
  %653 = vperm.xlu0 %652, %v650
  %v654 = vpop.permute.xlu0 %653
  %v656 = vadd.f32 %v646, %v654
  %v657 = vadd.f32 %v647, %v654
  %v658 = vadd.f32 %v648, %v654
  %v659 = vadd.f32 %v649, %v654
  %vm660 = vcmp.ge.f32.partialorder %v656, 0.0
  %vm661 = vcmp.ge.f32.partialorder %v657, 0.0
  %vm662 = vcmp.ge.f32.partialorder %v658, 0.0
  %vm663 = vcmp.ge.f32.partialorder %v659, 0.0
  %v664 = vmul.f32 %v656, 0.01
  %v665 = vmul.f32 %v657, 0.01
  %v666 = vmul.f32 %v658, 0.01
  %v667 = vmul.f32 %v659, 0.01
  %v668 = vsel %vm660, %v656, %v664
  %v669 = vsel %vm661, %v657, %v665
  %v670 = vsel %vm662, %v658, %v666
  %v671 = vsel %vm663, %v659, %v667
  %672 = vst [vmem:[#allocation3] sm:$0xff] %v668
  %673 = vst [vmem:[#allocation3 + $0x8] sm:$0xff] %v669
  %674 = vst [vmem:[#allocation3 + $0x10] sm:$0xff] %v670
  %675 = vst [vmem:[#allocation3 + $0x18] sm:$0xff] %v671
  %676 = vst [vmem:[#allocation3 + $0x80] sm:$0xff] %v39
  %677 = vst [vmem:[#allocation3 + $0x88] sm:$0xff] %v40
  %678 = vst [vmem:[#allocation3 + $0x90] sm:$0xff] %v41
  %679 = vst [vmem:[#allocation3 + $0x98] sm:$0xff] %v42
  %680 = vrot.lane.b32.xlu0 %v668, 127
  %v681 = vpop.permute.xlu0 %680
  %682 = vrot.lane.b32.xlu0 %v669, 127
  %v683 = vpop.permute.xlu0 %682
  %684 = vrot.lane.b32.xlu0 %v670, 127
  %v685 = vpop.permute.xlu0 %684
  %686 = vrot.lane.b32.xlu0 %v671, 127
  %v687 = vpop.permute.xlu0 %686
  %v688 = vsel %vm287, %v685, %v687
  %v689 = vsel %vm287, %v683, %v685
  %v690 = vsel %vm287, %v681, %v683
  %v691 = vsel %vm287, %v687, %v681
  %692 = vrot.lane.b32.xlu0 %v39, 127
  %v693 = vpop.permute.xlu0 %692
  %694 = vrot.lane.b32.xlu0 %v40, 127
  %v695 = vpop.permute.xlu0 %694
  %696 = vrot.lane.b32.xlu0 %v41, 127
  %v697 = vpop.permute.xlu0 %696
  %698 = vrot.lane.b32.xlu0 %v42, 127
  %v699 = vpop.permute.xlu0 %698
  %v700 = vsel %vm287, %v697, %v699
  %v701 = vsel %vm287, %v695, %v697
  %v702 = vsel %vm287, %v693, %v695
  %v703 = vsel %vm287, %v699, %v693
  %s704 = scalar_lea.vmem %s10, 1
  %v705 = vld [vmem:[%s704] ss:$4 sm:$0xf]
  %v707 = vlaneseq
  %v708 = vshrl.u32 %v707, 7
  %v709 = vsub.s32 0, %v708
  %v710 = vrot.slane %v705, %v709
  %v711 = vlaneseq
  %v712 = vshrl.u32 %v711, 7
  %v713 = vsub.s32 1, %v712
  %v714 = vrot.slane %v705, %v713
  %v715 = vlaneseq
  %v716 = vshrl.u32 %v715, 7
  %v717 = vsub.s32 2, %v716
  %v718 = vrot.slane %v705, %v717
  %v719 = vlaneseq
  %v720 = vshrl.u32 %v719, 7
  %v721 = vsub.s32 3, %v720
  %v722 = vrot.slane %v705, %v721
  %v727 = vmul.f32 %v690, %v710
  %v728 = vmul.f32 %v689, %v714
  %v729 = vmul.f32 %v688, %v718
  %v730 = vmul.f32 %v691, %v722
  %v731 = vmul.f32 %v702, %v710
  %v732 = vmul.f32 %v701, %v714
  %v733 = vmul.f32 %v700, %v718
  %v734 = vmul.f32 %v703, %v722
  %735 = vst [vmem:[#allocation3 + $0x20] sm:$0xff] %v727
  %736 = vst [vmem:[#allocation3 + $0x28] sm:$0xff] %v728
  %737 = vst [vmem:[#allocation3 + $0x30] sm:$0xff] %v729
  %738 = vst [vmem:[#allocation3 + $0x38] sm:$0xff] %v730
  %739 = vst [vmem:[#allocation3 + $0xa0] sm:$0xff] %v731
  %740 = vst [vmem:[#allocation3 + $0xa8] sm:$0xff] %v732
  %741 = vst [vmem:[#allocation3 + $0xb0] sm:$0xff] %v733
  %742 = vst [vmem:[#allocation3 + $0xb8] sm:$0xff] %v734
  %743 = vrot.lane.b32.xlu0 %v668, 112
  %v744 = vpop.permute.xlu0 %743
  %745 = vrot.lane.b32.xlu0 %v669, 112
  %v746 = vpop.permute.xlu0 %745
  %747 = vrot.lane.b32.xlu0 %v670, 112
  %v748 = vpop.permute.xlu0 %747
  %749 = vrot.lane.b32.xlu0 %v671, 112
  %v750 = vpop.permute.xlu0 %749
  %v751 = vsel %vm375, %v748, %v750
  %v752 = vsel %vm375, %v746, %v748
  %v753 = vsel %vm375, %v744, %v746
  %v754 = vsel %vm375, %v750, %v744
  %755 = vrot.lane.b32.xlu0 %v39, 112
  %v756 = vpop.permute.xlu0 %755
  %757 = vrot.lane.b32.xlu0 %v40, 112
  %v758 = vpop.permute.xlu0 %757
  %759 = vrot.lane.b32.xlu0 %v41, 112
  %v760 = vpop.permute.xlu0 %759
  %761 = vrot.lane.b32.xlu0 %v42, 112
  %v762 = vpop.permute.xlu0 %761
  %v763 = vsel %vm375, %v760, %v762
  %v764 = vsel %vm375, %v758, %v760
  %v765 = vsel %vm375, %v756, %v758
  %v766 = vsel %vm375, %v762, %v756
  %s767 = scalar_lea.vmem %s10, 2
  %v768 = vld [vmem:[%s767] ss:$4 sm:$0xf]
  %v770 = vlaneseq
  %v771 = vshrl.u32 %v770, 7
  %v772 = vsub.s32 0, %v771
  %v773 = vrot.slane %v768, %v772
  %v774 = vlaneseq
  %v775 = vshrl.u32 %v774, 7
  %v776 = vsub.s32 1, %v775
  %v777 = vrot.slane %v768, %v776
  %v778 = vlaneseq
  %v779 = vshrl.u32 %v778, 7
  %v780 = vsub.s32 2, %v779
  %v781 = vrot.slane %v768, %v780
  %v782 = vlaneseq
  %v783 = vshrl.u32 %v782, 7
  %v784 = vsub.s32 3, %v783
  %v785 = vrot.slane %v768, %v784
  %v790 = vmul.f32 %v753, %v773
  %v791 = vmul.f32 %v752, %v777
  %v792 = vmul.f32 %v751, %v781
  %v793 = vmul.f32 %v754, %v785
  %v794 = vmul.f32 %v765, %v773
  %v795 = vmul.f32 %v764, %v777
  %v796 = vmul.f32 %v763, %v781
  %v797 = vmul.f32 %v766, %v785
  %798 = vst [vmem:[#allocation3 + $0x40] sm:$0xff] %v790
  %799 = vst [vmem:[#allocation3 + $0x48] sm:$0xff] %v791
  %800 = vst [vmem:[#allocation3 + $0x50] sm:$0xff] %v792
  %801 = vst [vmem:[#allocation3 + $0x58] sm:$0xff] %v793
  %802 = vst [vmem:[#allocation3 + $0xc0] sm:$0xff] %v794
  %803 = vst [vmem:[#allocation3 + $0xc8] sm:$0xff] %v795
  %804 = vst [vmem:[#allocation3 + $0xd0] sm:$0xff] %v796
  %805 = vst [vmem:[#allocation3 + $0xd8] sm:$0xff] %v797
  %806 = vrot.lane.b32.xlu0 %v668, 111
  %v807 = vpop.permute.xlu0 %806
  %808 = vrot.lane.b32.xlu0 %v669, 111
  %v809 = vpop.permute.xlu0 %808
  %810 = vrot.lane.b32.xlu0 %v670, 111
  %v811 = vpop.permute.xlu0 %810
  %812 = vrot.lane.b32.xlu0 %v671, 111
  %v813 = vpop.permute.xlu0 %812
  %v814 = vsel %vm419, %v811, %v813
  %v815 = vsel %vm419, %v809, %v811
  %v816 = vsel %vm419, %v807, %v809
  %v817 = vsel %vm419, %v813, %v807
  %818 = vrot.lane.b32.xlu0 %v39, 111
  %v819 = vpop.permute.xlu0 %818
  %820 = vrot.lane.b32.xlu0 %v40, 111
  %v821 = vpop.permute.xlu0 %820
  %822 = vrot.lane.b32.xlu0 %v41, 111
  %v823 = vpop.permute.xlu0 %822
  %824 = vrot.lane.b32.xlu0 %v42, 111
  %v825 = vpop.permute.xlu0 %824
  %v826 = vsel %vm419, %v823, %v825
  %v827 = vsel %vm419, %v821, %v823
  %v828 = vsel %vm419, %v819, %v821
  %v829 = vsel %vm419, %v825, %v819
  %s830 = scalar_lea.vmem %s10, 3
  %v831 = vld [vmem:[%s830] ss:$4 sm:$0xf]
  %v833 = vlaneseq
  %v834 = vshrl.u32 %v833, 7
  %v835 = vsub.s32 0, %v834
  %v836 = vrot.slane %v831, %v835
  %v837 = vlaneseq
  %v838 = vshrl.u32 %v837, 7
  %v839 = vsub.s32 1, %v838
  %v840 = vrot.slane %v831, %v839
  %v841 = vlaneseq
  %v842 = vshrl.u32 %v841, 7
  %v843 = vsub.s32 2, %v842
  %v844 = vrot.slane %v831, %v843
  %v845 = vlaneseq
  %v846 = vshrl.u32 %v845, 7
  %v847 = vsub.s32 3, %v846
  %v848 = vrot.slane %v831, %v847
  %v853 = vmul.f32 %v816, %v836
  %v854 = vmul.f32 %v815, %v840
  %v855 = vmul.f32 %v814, %v844
  %v856 = vmul.f32 %v817, %v848
  %v857 = vmul.f32 %v828, %v836
  %v858 = vmul.f32 %v827, %v840
  %v859 = vmul.f32 %v826, %v844
  %v860 = vmul.f32 %v829, %v848
  %861 = vst [vmem:[#allocation3 + $0x60] sm:$0xff] %v853
  %862 = vst [vmem:[#allocation3 + $0x68] sm:$0xff] %v854
  %863 = vst [vmem:[#allocation3 + $0x70] sm:$0xff] %v855
  %864 = vst [vmem:[#allocation3 + $0x78] sm:$0xff] %v856
  %865 = vst [vmem:[#allocation3 + $0xe0] sm:$0xff] %v857
  %866 = vst [vmem:[#allocation3 + $0xe8] sm:$0xff] %v858
  %867 = vst [vmem:[#allocation3 + $0xf0] sm:$0xff] %v859
  %868 = vst [vmem:[#allocation3 + $0xf8] sm:$0xff] %v860
  %v869 = vld [vmem:[%s8] sm:$0xf]
  %v870 = vld [vmem:[%s8 + $0x4] sm:$0xf]
  %v871 = vld [vmem:[#allocation3] sm:$0xff]
  %v872 = vld [vmem:[#allocation3 + $0x8] sm:$0xff]
  %v873 = vld [vmem:[#allocation3 + $0x10] sm:$0xff]
  %v874 = vld [vmem:[#allocation3 + $0x18] sm:$0xff]
  %v875 = vld [vmem:[#allocation3 + $0x20] sm:$0xff]
  %v876 = vld [vmem:[#allocation3 + $0x28] sm:$0xff]
  %v877 = vld [vmem:[#allocation3 + $0x30] sm:$0xff]
  %v878 = vld [vmem:[#allocation3 + $0x38] sm:$0xff]
  %v879 = vld [vmem:[#allocation3 + $0x40] sm:$0xff]
  %v880 = vld [vmem:[#allocation3 + $0x48] sm:$0xff]
  %v881 = vld [vmem:[#allocation3 + $0x50] sm:$0xff]
  %v882 = vld [vmem:[#allocation3 + $0x58] sm:$0xff]
  %v883 = vld [vmem:[#allocation3 + $0x60] sm:$0xff]
  %v884 = vld [vmem:[#allocation3 + $0x68] sm:$0xff]
  %v885 = vld [vmem:[#allocation3 + $0x70] sm:$0xff]
  %v886 = vld [vmem:[#allocation3 + $0x78] sm:$0xff]
  %v887 = vld [vmem:[#allocation3 + $0x80] sm:$0xff]
  %v888 = vld [vmem:[#allocation3 + $0x88] sm:$0xff]
  %v889 = vld [vmem:[#allocation3 + $0x90] sm:$0xff]
  %v890 = vld [vmem:[#allocation3 + $0x98] sm:$0xff]
  %v891 = vld [vmem:[#allocation3 + $0xa0] sm:$0xff]
  %v892 = vld [vmem:[#allocation3 + $0xa8] sm:$0xff]
  %v893 = vld [vmem:[#allocation3 + $0xb0] sm:$0xff]
  %v894 = vld [vmem:[#allocation3 + $0xb8] sm:$0xff]
  %v895 = vld [vmem:[#allocation3 + $0xc0] sm:$0xff]
  %v896 = vld [vmem:[#allocation3 + $0xc8] sm:$0xff]
  %v897 = vld [vmem:[#allocation3 + $0xd0] sm:$0xff]
  %v898 = vld [vmem:[#allocation3 + $0xd8] sm:$0xff]
  %v899 = vld [vmem:[#allocation3 + $0xe0] sm:$0xff]
  %v900 = vld [vmem:[#allocation3 + $0xe8] sm:$0xff]
  %v901 = vld [vmem:[#allocation3 + $0xf0] sm:$0xff]
  %v902 = vld [vmem:[#allocation3 + $0xf8] sm:$0xff]
  %v903 = vpack.c.bf16 %v875, %v871
  %v904 = vpack.c.bf16 %v876, %v872
  %v905 = vpack.c.bf16 %v877, %v873
  %v906 = vpack.c.bf16 %v878, %v874
  %v907 = vpack.c.bf16 %v883, %v879
  %v908 = vpack.c.bf16 %v884, %v880
  %v909 = vpack.c.bf16 %v885, %v881
  %v910 = vpack.c.bf16 %v886, %v882
  %v911 = vpack.c.bf16 %v891, %v887
  %v912 = vpack.c.bf16 %v892, %v888
  %v913 = vpack.c.bf16 %v893, %v889
  %v914 = vpack.c.bf16 %v894, %v890
  %v915 = vpack.c.bf16 %v899, %v895
  %v916 = vpack.c.bf16 %v900, %v896
  %v917 = vpack.c.bf16 %v901, %v897
  %v918 = vpack.c.bf16 %v902, %v898
  %v919 = vld [vmem:[%s9] sm:$0xff]
  %v920 = vld [vmem:[%s9 + $0x8] sm:$0xff]
  %922 = vset.pattern.permute.xlu0 0
  %923 = vperm.xlu0 %922, %v919
  %v924 = vpop.permute.xlu0 %923
  %927 = vset.pattern.permute.xlu0 0
  %928 = vperm.xlu0 %927, %v920
  %v929 = vpop.permute.xlu0 %928
  %v933 = vunpack.c.l.b16 %v869
  %v934 = vunpack.c.l.b16 %v870
  %v935 = vpack.c.b16 %v934, %v933
  %vm936 = vcmask 523264
  %v938 = vsel %vm936, %v935, 0
  %940 = vmatprep.subr.bf16.mxu0 0
  %941 = vmatpush1.bf16.msra.mxu0 0
  %942 = vmatprep.subr.bf16.mxu0 0
  %943 = vmatpush1.bf16.msra.mxu0 0
  %944 = vmatprep.subr.bf16.mxu0 0
  %945 = vmatpush1.bf16.msra.mxu0 0
  %946 = vmatprep.subr.bf16.mxu0 0
  %947 = vmatpush1.bf16.msra.mxu0 0
  %948 = vmatprep.subr.bf16.mxu0 %v916
  %949 = vmatpush1.bf16.msra.mxu0 %v915
  %950 = vmatprep.subr.bf16.mxu0 %v912
  %951 = vmatpush1.bf16.msra.mxu0 %v911
  %952 = vmatprep.subr.bf16.mxu0 %v908
  %953 = vmatpush1.bf16.msra.mxu0 %v907
  %954 = vmatprep.subr.bf16.mxu0 %v904
  %955 = vmatpush1.bf16.msra.mxu0 %v903
  %956 = vmatprep.subr.bf16.mxu0 0
  %957 = vmatpush2.bf16.msra.mxu0 0
  %958 = vmatprep.subr.bf16.mxu0 0
  %959 = vmatpush2.bf16.msra.mxu0 0
  %960 = vmatprep.subr.bf16.mxu0 0
  %961 = vmatpush2.bf16.msra.mxu0 0
  %962 = vmatprep.subr.bf16.mxu0 0
  %963 = vmatpush2.bf16.msra.mxu0 0
  %964 = vmatprep.subr.bf16.mxu0 0
  %965 = vmatpush2.bf16.msra.mxu0 0
  %966 = vmatprep.subr.bf16.mxu0 0
  %967 = vmatpush2.bf16.msra.mxu0 0
  %968 = vmatprep.subr.bf16.mxu0 0
  %969 = vmatpush2.bf16.msra.mxu0 0
  %970 = vmatprep.subr.bf16.mxu0 0
  %971 = vmatpush2.bf16.msra.mxu0 0
  %972 = vmatprep.mubr.bf16.mxu0 0
  %973 = vmatmul.mubr.bf16.gmra.mxu0 %v938
  %v974 = vpop.f32.mrf.mxu0
  %v975 = vadd.f32 %v924, %v974
  %v976 = vpop.f32.mrf.mxu0
  %v977 = vadd.f32 %v924, %v976
  %v978 = vpop.f32.mrf.mxu0
  %v979 = vadd.f32 %v929, %v978
  %v980 = vpop.f32.mrf.mxu0
  %v981 = vadd.f32 %v929, %v980
  %982 = vdwg.mxu0
  %983 = vmatprep.subr.bf16.mxu0 0
  %984 = vmatpush1.bf16.msra.mxu0 0
  %985 = vmatprep.subr.bf16.mxu0 0
  %986 = vmatpush1.bf16.msra.mxu0 0
  %987 = vmatprep.subr.bf16.mxu0 0
  %988 = vmatpush1.bf16.msra.mxu0 0
  %989 = vmatprep.subr.bf16.mxu0 0
  %990 = vmatpush1.bf16.msra.mxu0 0
  %991 = vmatprep.subr.bf16.mxu0 %v918
  %992 = vmatpush1.bf16.msra.mxu0 %v917
  %993 = vmatprep.subr.bf16.mxu0 %v914
  %994 = vmatpush1.bf16.msra.mxu0 %v913
  %995 = vmatprep.subr.bf16.mxu0 %v910
  %996 = vmatpush1.bf16.msra.mxu0 %v909
  %997 = vmatprep.subr.bf16.mxu0 %v906
  %998 = vmatpush1.bf16.msra.mxu0 %v905
  %999 = vmatprep.subr.bf16.mxu0 0
  %1000 = vmatpush2.bf16.msra.mxu0 0
  %1001 = vmatprep.subr.bf16.mxu0 0
  %1002 = vmatpush2.bf16.msra.mxu0 0
  %1003 = vmatprep.subr.bf16.mxu0 0
  %1004 = vmatpush2.bf16.msra.mxu0 0
  %1005 = vmatprep.subr.bf16.mxu0 0
  %1006 = vmatpush2.bf16.msra.mxu0 0
  %1007 = vmatprep.subr.bf16.mxu0 0
  %1008 = vmatpush2.bf16.msra.mxu0 0
  %1009 = vmatprep.subr.bf16.mxu0 0
  %1010 = vmatpush2.bf16.msra.mxu0 0
  %1011 = vmatprep.subr.bf16.mxu0 0
  %1012 = vmatpush2.bf16.msra.mxu0 0
  %1013 = vmatprep.subr.bf16.mxu0 0
  %1014 = vmatpush2.bf16.msra.mxu0 0
  %1015 = vmatprep.mubr.bf16.mxu0 0
  %1016 = vmatmul.mubr.bf16.gmra.mxu0 %v938
  %v1017 = vpop.f32.mrf.mxu0
  %v1018 = vadd.f32 %v924, %v1017
  %v1019 = vpop.f32.mrf.mxu0
  %v1020 = vadd.f32 %v924, %v1019
  %v1021 = vpop.f32.mrf.mxu0
  %v1022 = vadd.f32 %v929, %v1021
  %v1023 = vpop.f32.mrf.mxu0
  %v1024 = vadd.f32 %v929, %v1023
  %1025 = vdwg.mxu0
  %1026 = vst [vmem:[%s11] sm:$0xff] %v975
  %1027 = vst [vmem:[%s11 + $0x8] sm:$0xff] %v977
  %1028 = vst [vmem:[%s11 + $0x10] sm:$0xff] %v1018
  %1029 = vst [vmem:[%s11 + $0x18] sm:$0xff] %v1020
  %1030 = vst [vmem:[%s11 + $0x20] sm:$0xff] %v979
  %1031 = vst [vmem:[%s11 + $0x28] sm:$0xff] %v981
  %1032 = vst [vmem:[%s11 + $0x30] sm:$0xff] %v1022
  %1033 = vst [vmem:[%s11 + $0x38] sm:$0xff] %v1024
  // Predicated region
  $region46: #{res_block_decoder_forward.1} parent=0 // pred_check
    _
  $region47: #{res_block_decoder_forward.1} parent=0 // pred_check_branch
    %1035 = sbr.rel (0) target = $region49
  $region48: #{res_block_decoder_forward.1} parent=0 // pred_region
    _
  $region49: #{res_block_decoder_forward.1} parent=0 // pred_fallthru
    _
  // Predicated region
  $region50: #{res_block_decoder_forward.1} parent=0 // pred_check
    _
  $region51: #{res_block_decoder_forward.1} parent=0 // pred_check_branch
    %1037 = sbr.rel (0) target = $region53
  $region52: #{res_block_decoder_forward.1} parent=0 // pred_region
    _
  $region53: #{res_block_decoder_forward.1} parent=0 // pred_fallthru
    _

</llo_original>
